<compile_context>
chip_gen: v5e
topology: v5e:2x2
jax: 0.10.0
libtpu: 0.0.40
codegen_flags: <defaults>
</compile_context>

<pallas_src>
import functools

import jax
import jax.numpy as jnp
import numpy as np
from jax import lax
from jax.experimental import pallas as pl
from jax.experimental.pallas import tpu as pltpu

# ---- sizes implied by the PyTorch module (dsads config) ----
IN_CH = 45                         # conv1 in_channels
KER = 9                            # kernel width
C1 = 16                            # conv1 out_channels
C2 = 32                            # conv2 out_channels
W_IN = 125                         # input window length (so fc_size = 32*25 = 800)
W1_OUT = W_IN - KER + 1            # 117
W1_POOL = (W1_OUT - 2) // 2 + 1    # 58
W2_OUT = W1_POOL - KER + 1         # 50
W2_POOL = (W2_OUT - 2) // 2 + 1    # 25
FC_IN = C2 * W2_POOL               # 800
N_FEATURE = 64
LANE = 128


def _round_up(v, m):
    return (v + m - 1) // m * m


def network_kernel(x_ref, w1_ref, b1_ref, w2_ref, b2_ref, wfc_ref, bfc_ref,
                   out_ref, pool1_ref, feat_ref):
    tb = out_ref.shape[1]                       # samples in this tile (lane axis)

    # Hoist bias broadcasts out of the loops (JAX does not CSE broadcast_in_dim).
    b1b = jnp.broadcast_to(b1_ref[...], (C1, tb))
    b2b = jnp.broadcast_to(b2_ref[...], (C2, tb))
    bfcb = jnp.broadcast_to(bfc_ref[...], (N_FEATURE, tb))

    # ---- stage 1: conv1 (9 taps) + ReLU + maxpool(1,2)/2, batched over the tile.
    # x layout is (W_IN, IN_CH, TB): width on the leading axis, samples on lanes, so
    # every matmul RHS is a full (IN_CH, TB) tile picked by a dynamic leading index.
    def stage1(i, carry):
        acc_e = jnp.dot(w1_ref[0], x_ref[2 * i],
                        preferred_element_type=jnp.float32)
        acc_o = jnp.dot(w1_ref[0], x_ref[2 * i + 1],
                        preferred_element_type=jnp.float32)
        for k in range(1, KER):                 # two independent accumulator chains
            acc_e = acc_e + jnp.dot(w1_ref[k], x_ref[2 * i + k],
                                    preferred_element_type=jnp.float32)
            acc_o = acc_o + jnp.dot(w1_ref[k], x_ref[2 * i + k + 1],
                                    preferred_element_type=jnp.float32)
        # pool then bias+ReLU (monotonic -> identical to ReLU/pool of the module)
        pooled = jnp.maximum(jnp.maximum(acc_e, acc_o) + b1b, 0.0)
        pool1_ref[i] = pooled.astype(jnp.bfloat16)
        return carry

    lax.fori_loop(0, W1_POOL, stage1, 0)

    # ---- stage 2: conv2 + ReLU + maxpool; stash pooled features p-major (p*32 + c).
    def stage2(i, carry):
        acc_e = jnp.dot(w2_ref[0], pool1_ref[2 * i],
                        preferred_element_type=jnp.float32)
        acc_o = jnp.dot(w2_ref[0], pool1_ref[2 * i + 1],
                        preferred_element_type=jnp.float32)
        for k in range(1, KER):
            acc_e = acc_e + jnp.dot(w2_ref[k], pool1_ref[2 * i + k],
                                    preferred_element_type=jnp.float32)
            acc_o = acc_o + jnp.dot(w2_ref[k], pool1_ref[2 * i + k + 1],
                                    preferred_element_type=jnp.float32)
        pooled = jnp.maximum(jnp.maximum(acc_e, acc_o) + b2b, 0.0)
        off = pl.multiple_of(i * C2, C2)
        feat_ref[pl.ds(off, C2), :] = pooled.astype(jnp.bfloat16)
        return carry

    lax.fori_loop(0, W2_POOL, stage2, 0)

    # ---- fc1: ONE lane-dense (64, 800) @ (800, TB) matmul + bias + ReLU.
    # NOTE: both scratches are fully overwritten above before being read here.
    fc = jnp.dot(wfc_ref[...], feat_ref[...], preferred_element_type=jnp.float32)
    out_ref[...] = jnp.maximum(fc + bfcb, 0.0)


@functools.partial(jax.jit, static_argnames=("block_batch",))
def network_forward(x_nchw, params, *, block_batch=256):
    """x_nchw: (B, 45, 1, 125) NCHW -> features (B, 64)."""
    w1r, b1, w2r, b2, wfcr, bfc = params
    B = x_nchw.shape[0]

    # Samples live on the lane axis -> the batch tile must be a multiple of 128.
    tb = max(LANE, (int(block_batch) // LANE) * LANE)
    b_ceil = _round_up(B, LANE)
    tb = min(tb, b_ceil)
    # v7x has two TensorCores: prefer >=2 grid steps when the batch allows it.
    if b_ceil // tb < 2 and b_ceil >= 2 * LANE and (b_ceil // 2) % LANE == 0:
        tb = b_ceil // 2
    b_pad = _round_up(B, tb)
    n_tiles = b_pad // tb

    # W-major layout: x4[g, w, c, b] = x[g*tb + b, c, w]; bf16 halves HBM bytes.
    x = x_nchw.reshape(B, IN_CH, W_IN).astype(jnp.bfloat16)
    if b_pad != B:
        x = jnp.pad(x, ((0, b_pad - B), (0, 0), (0, 0)))
    x4 = x.reshape(n_tiles, tb, IN_CH, W_IN).transpose(0, 3, 2, 1)

    out = pl.pallas_call(
        network_kernel,
        out_shape=jax.ShapeDtypeStruct((n_tiles, N_FEATURE, tb), jnp.float32),
        grid_spec=pltpu.PrefetchScalarGridSpec(
            num_scalar_prefetch=0,
            grid=(n_tiles,),
            in_specs=[
                pl.BlockSpec((None, W_IN, IN_CH, tb), lambda g: (g, 0, 0, 0)),  # x
                pl.BlockSpec((KER, C1, IN_CH), lambda g: (0, 0, 0)),            # w1
                pl.BlockSpec((C1, 1), lambda g: (0, 0)),                        # b1
                pl.BlockSpec((KER, C2, C1), lambda g: (0, 0, 0)),               # w2
                pl.BlockSpec((C2, 1), lambda g: (0, 0)),                        # b2
                pl.BlockSpec((N_FEATURE, FC_IN), lambda g: (0, 0)),             # wfc
                pl.BlockSpec((N_FEATURE, 1), lambda g: (0, 0)),                 # bfc
            ],
            out_specs=pl.BlockSpec((None, N_FEATURE, tb), lambda g: (g, 0, 0)),
            scratch_shapes=[
                pltpu.VMEM((W1_POOL, C1, tb), jnp.bfloat16),   # pool1 activations
                pltpu.VMEM((FC_IN, tb), jnp.bfloat16),         # pooled feats, p-major
            ],
        ),
        compiler_params=pltpu.CompilerParams(
            dimension_semantics=("parallel",)),
    )(x4, w1r, b1, w2r, b2, wfcr, bfc)

    # (n_tiles, 64, TB) -> (B, 64)
    return out.transpose(0, 2, 1).reshape(b_pad, N_FEATURE)[:B]


def init_params(key):
    """Deterministic synthetic parameters, PyTorch shapes repacked for the kernel."""
    k1, k2, k3, k4, k5, k6 = jax.random.split(key, 6)
    w1 = jax.random.normal(k1, (C1, IN_CH, 1, KER), jnp.float32) * 0.05   # Conv2d w
    b1 = jax.random.normal(k2, (C1,), jnp.float32) * 0.05
    w2 = jax.random.normal(k3, (C2, C1, 1, KER), jnp.float32) * 0.05
    b2 = jax.random.normal(k4, (C2,), jnp.float32) * 0.05
    wfc = jax.random.normal(k5, (N_FEATURE, FC_IN), jnp.float32) * 0.02   # Linear w
    bfc = jax.random.normal(k6, (N_FEATURE,), jnp.float32) * 0.02
    # Repack: per-tap conv matrices (bf16 MXU operands); fc weight columns permuted
    # from PyTorch's c-major (c*25+p) flatten to the kernel's p-major (p*32+c) stash.
    w1r = jnp.transpose(w1[:, :, 0, :], (2, 0, 1)).astype(jnp.bfloat16)   # (9, 16, 45)
    w2r = jnp.transpose(w2[:, :, 0, :], (2, 0, 1)).astype(jnp.bfloat16)   # (9, 32, 16)
    wfcr = wfc.reshape(N_FEATURE, C2, W2_POOL).transpose(0, 2, 1)
    wfcr = wfcr.reshape(N_FEATURE, FC_IN).astype(jnp.bfloat16)            # (64, 800)
    return (w1r, b1.reshape(C1, 1), w2r, b2.reshape(C2, 1), wfcr,
            bfc.reshape(N_FEATURE, 1))


def reference_forward(x_nchw, params):
    """Pure-JAX reference mirroring the kernel's bf16 matmul-operand rounding."""
    w1r, b1, w2r, b2, wfcr, bfc = params
    B = x_nchw.shape[0]
    f32 = lambda a: a.astype(jnp.float32)
    hi = lax.Precision.HIGHEST
    x = f32(x_nchw.reshape(B, IN_CH, W_IN).astype(jnp.bfloat16))
    w1, w2, wfc = f32(w1r), f32(w2r), f32(wfcr)

    conv1 = sum(jnp.einsum('oc,bcw->bow', w1[k], x[:, :, k:k + W1_OUT], precision=hi)
                for k in range(KER))
    p1 = jnp.maximum(conv1[:, :, 0:2 * W1_POOL:2], conv1[:, :, 1:2 * W1_POOL:2])
    p1 = f32(jnp.maximum(p1 + f32(b1)[None], 0.0).astype(jnp.bfloat16))

    conv2 = sum(jnp.einsum('oc,bcw->bow', w2[k], p1[:, :, k:k + W2_OUT], precision=hi)
                for k in range(KER))
    p2 = jnp.maximum(conv2[:, :, 0:2 * W2_POOL:2], conv2[:, :, 1:2 * W2_POOL:2])
    p2 = f32(jnp.maximum(p2 + f32(b2)[None], 0.0).astype(jnp.bfloat16))

    feat = p2.transpose(0, 2, 1).reshape(B, FC_IN)          # p-major, matches wfcr
    out = jnp.einsum('bf,nf->bn', feat, wfc, precision=hi) + f32(bfc)[:, 0][None]
    return jnp.maximum(out, 0.0)


if __name__ == "__main__":
    key = jax.random.PRNGKey(0)
    kx, kp = jax.random.split(key)
    # x mirrors the PyTorch NCHW input: (batch=16, channels=45, H=1, W=125)
    B = 16
    x = jax.random.normal(kx, (B, IN_CH, 1, W_IN), jnp.float32)
    params = init_params(kp)

    # block_batch=128 keeps batch padding modest for this small test; production
    # batches should use 256-512 (full 256-wide MXU passes, still well under VMEM).
    feat = network_forward(x, params, block_batch=128)
    feat = jax.block_until_ready(feat)

    ref = reference_forward(x, params)
    assert feat.shape == (B, N_FEATURE)
    # bf16 matmul operands / pooled activations -> tolerances relaxed vs. pure f32.
    np.testing.assert_allclose(np.asarray(feat), np.asarray(ref), rtol=2e-2, atol=2e-2)
    print("KERNEL_OK")
</pallas_src>

<mosaic_0001>
module attributes {stable_mosaic.version = 11 : i64} {
  func.func @network_kernel(%arg0: i32, %arg1: memref<1x125x45x128xbf16, #tpu.memory_space<vmem>>, %arg2: memref<9x16x45xbf16, #tpu.memory_space<vmem>>, %arg3: memref<16x1xf32, #tpu.memory_space<vmem>>, %arg4: memref<9x32x16xbf16, #tpu.memory_space<vmem>>, %arg5: memref<32x1xf32, #tpu.memory_space<vmem>>, %arg6: memref<64x800xbf16, #tpu.memory_space<vmem>>, %arg7: memref<64x1xf32, #tpu.memory_space<vmem>>, %arg8: memref<1x64x128xf32, #tpu.memory_space<vmem>>, %arg9: memref<58x16x128xbf16, #tpu.memory_space<vmem>>, %arg10: memref<800x128xbf16, #tpu.memory_space<vmem>>) attributes {dimension_semantics = [#tpu.dimension_semantics<parallel>], iteration_bounds = array<i64: 1>, scalar_prefetch = 0 : i64, scratch_operands = 2 : i64, tpu.core_type = #tpu.core_type<tc>, window_params = [{transform_indices = @transform_0, window_bounds = array<i64: 1, 125, 45, 128>}, {pipeline_mode = #tpu.pipeline_mode<synchronous>, transform_indices = @transform_1, window_bounds = array<i64: 9, 16, 45>}, {pipeline_mode = #tpu.pipeline_mode<synchronous>, transform_indices = @transform_2, window_bounds = array<i64: 16, 1>}, {pipeline_mode = #tpu.pipeline_mode<synchronous>, transform_indices = @transform_3, window_bounds = array<i64: 9, 32, 16>}, {pipeline_mode = #tpu.pipeline_mode<synchronous>, transform_indices = @transform_4, window_bounds = array<i64: 32, 1>}, {pipeline_mode = #tpu.pipeline_mode<synchronous>, transform_indices = @transform_5, window_bounds = array<i64: 64, 800>}, {pipeline_mode = #tpu.pipeline_mode<synchronous>, transform_indices = @transform_6, window_bounds = array<i64: 64, 1>}, {transform_indices = @transform_7, window_bounds = array<i64: 1, 64, 128>}]} {
    %c0 = arith.constant 0 : index
    %c0_0 = arith.constant 0 : index
    %0 = vector.load %arg3[%c0, %c0_0] : memref<16x1xf32, #tpu.memory_space<vmem>>, vector<16x1xf32>
    %1 = vector.shape_cast %0 : vector<16x1xf32> to vector<16x1xf32>
    %2 = vector.broadcast %1 : vector<16x1xf32> to vector<16x128xf32>
    %c0_1 = arith.constant 0 : index
    %c0_2 = arith.constant 0 : index
    %3 = vector.load %arg5[%c0_1, %c0_2] : memref<32x1xf32, #tpu.memory_space<vmem>>, vector<32x1xf32>
    %4 = vector.shape_cast %3 : vector<32x1xf32> to vector<32x1xf32>
    %5 = vector.broadcast %4 : vector<32x1xf32> to vector<32x128xf32>
    %c0_3 = arith.constant 0 : index
    %c0_4 = arith.constant 0 : index
    %6 = vector.load %arg7[%c0_3, %c0_4] : memref<64x1xf32, #tpu.memory_space<vmem>>, vector<64x1xf32>
    %7 = vector.shape_cast %6 : vector<64x1xf32> to vector<64x1xf32>
    %8 = vector.broadcast %7 : vector<64x1xf32> to vector<64x128xf32>
    %c0_i32 = arith.constant 0 : i32
    %c58_i32 = arith.constant 58 : i32
    %9 = arith.addi %c0_i32, %c58_i32 : i32
    %c1_i32 = arith.constant 1 : i32
    scf.for %arg11 = %c0_i32 to %9 step %c1_i32  : i32 {
      %c0_17 = arith.constant 0 : index
      %c0_18 = arith.constant 0 : index
      %c0_19 = arith.constant 0 : index
      %20 = vector.load %arg2[%c0_17, %c0_18, %c0_19] : memref<9x16x45xbf16, #tpu.memory_space<vmem>>, vector<1x16x45xbf16>
      %21 = vector.shape_cast %20 : vector<1x16x45xbf16> to vector<16x45xbf16>
      %c2_i32 = arith.constant 2 : i32
      %22 = arith.muli %c2_i32, %arg11 : i32
      %c0_20 = arith.constant 0 : index
      %23 = arith.index_cast %22 : i32 to index
      %c0_21 = arith.constant 0 : index
      %c0_22 = arith.constant 0 : index
      %24 = vector.load %arg1[%c0_20, %23, %c0_21, %c0_22] : memref<1x125x45x128xbf16, #tpu.memory_space<vmem>>, vector<1x1x45x128xbf16>
      %25 = vector.shape_cast %24 : vector<1x1x45x128xbf16> to vector<45x128xbf16>
      %cst_23 = arith.constant dense<0.000000e+00> : vector<16x128xf32>
      %26 = tpu.matmul %21, %25, %cst_23 {dimension_numbers = #tpu.dot_dimension_numbers<[1], [0], [0], [1], [0, 0, 1, 1], [], []>} : vector<16x45xbf16>, vector<45x128xbf16>, vector<16x128xf32> -> vector<16x128xf32>
      %c0_24 = arith.constant 0 : index
      %c0_25 = arith.constant 0 : index
      %c0_26 = arith.constant 0 : index
      %27 = vector.load %arg2[%c0_24, %c0_25, %c0_26] : memref<9x16x45xbf16, #tpu.memory_space<vmem>>, vector<1x16x45xbf16>
      %28 = vector.shape_cast %27 : vector<1x16x45xbf16> to vector<16x45xbf16>
      %c2_i32_27 = arith.constant 2 : i32
      %29 = arith.muli %c2_i32_27, %arg11 : i32
      %c1_i32_28 = arith.constant 1 : i32
      %30 = arith.addi %29, %c1_i32_28 : i32
      %c0_29 = arith.constant 0 : index
      %31 = arith.index_cast %30 : i32 to index
      %c0_30 = arith.constant 0 : index
      %c0_31 = arith.constant 0 : index
      %32 = vector.load %arg1[%c0_29, %31, %c0_30, %c0_31] : memref<1x125x45x128xbf16, #tpu.memory_space<vmem>>, vector<1x1x45x128xbf16>
      %33 = vector.shape_cast %32 : vector<1x1x45x128xbf16> to vector<45x128xbf16>
      %cst_32 = arith.constant dense<0.000000e+00> : vector<16x128xf32>
      %34 = tpu.matmul %28, %33, %cst_32 {dimension_numbers = #tpu.dot_dimension_numbers<[1], [0], [0], [1], [0, 0, 1, 1], [], []>} : vector<16x45xbf16>, vector<45x128xbf16>, vector<16x128xf32> -> vector<16x128xf32>
      %c1 = arith.constant 1 : index
      %c0_33 = arith.constant 0 : index
      %c0_34 = arith.constant 0 : index
      %35 = vector.load %arg2[%c1, %c0_33, %c0_34] : memref<9x16x45xbf16, #tpu.memory_space<vmem>>, vector<1x16x45xbf16>
      %36 = vector.shape_cast %35 : vector<1x16x45xbf16> to vector<16x45xbf16>
      %c2_i32_35 = arith.constant 2 : i32
      %37 = arith.muli %c2_i32_35, %arg11 : i32
      %c1_i32_36 = arith.constant 1 : i32
      %38 = arith.addi %37, %c1_i32_36 : i32
      %c0_37 = arith.constant 0 : index
      %39 = arith.index_cast %38 : i32 to index
      %c0_38 = arith.constant 0 : index
      %c0_39 = arith.constant 0 : index
      %40 = vector.load %arg1[%c0_37, %39, %c0_38, %c0_39] : memref<1x125x45x128xbf16, #tpu.memory_space<vmem>>, vector<1x1x45x128xbf16>
      %41 = vector.shape_cast %40 : vector<1x1x45x128xbf16> to vector<45x128xbf16>
      %cst_40 = arith.constant dense<0.000000e+00> : vector<16x128xf32>
      %42 = tpu.matmul %36, %41, %cst_40 {dimension_numbers = #tpu.dot_dimension_numbers<[1], [0], [0], [1], [0, 0, 1, 1], [], []>} : vector<16x45xbf16>, vector<45x128xbf16>, vector<16x128xf32> -> vector<16x128xf32>
      %43 = arith.addf %26, %42 : vector<16x128xf32>
      %c1_41 = arith.constant 1 : index
      %c0_42 = arith.constant 0 : index
      %c0_43 = arith.constant 0 : index
      %44 = vector.load %arg2[%c1_41, %c0_42, %c0_43] : memref<9x16x45xbf16, #tpu.memory_space<vmem>>, vector<1x16x45xbf16>
      %45 = vector.shape_cast %44 : vector<1x16x45xbf16> to vector<16x45xbf16>
      %c2_i32_44 = arith.constant 2 : i32
      %46 = arith.muli %c2_i32_44, %arg11 : i32
      %c1_i32_45 = arith.constant 1 : i32
      %47 = arith.addi %46, %c1_i32_45 : i32
      %c1_i32_46 = arith.constant 1 : i32
      %48 = arith.addi %47, %c1_i32_46 : i32
      %c0_47 = arith.constant 0 : index
      %49 = arith.index_cast %48 : i32 to index
      %c0_48 = arith.constant 0 : index
      %c0_49 = arith.constant 0 : index
      %50 = vector.load %arg1[%c0_47, %49, %c0_48, %c0_49] : memref<1x125x45x128xbf16, #tpu.memory_space<vmem>>, vector<1x1x45x128xbf16>
      %51 = vector.shape_cast %50 : vector<1x1x45x128xbf16> to vector<45x128xbf16>
      %cst_50 = arith.constant dense<0.000000e+00> : vector<16x128xf32>
      %52 = tpu.matmul %45, %51, %cst_50 {dimension_numbers = #tpu.dot_dimension_numbers<[1], [0], [0], [1], [0, 0, 1, 1], [], []>} : vector<16x45xbf16>, vector<45x128xbf16>, vector<16x128xf32> -> vector<16x128xf32>
      %53 = arith.addf %34, %52 : vector<16x128xf32>
      %c2 = arith.constant 2 : index
      %c0_51 = arith.constant 0 : index
      %c0_52 = arith.constant 0 : index
      %54 = vector.load %arg2[%c2, %c0_51, %c0_52] : memref<9x16x45xbf16, #tpu.memory_space<vmem>>, vector<1x16x45xbf16>
      %55 = vector.shape_cast %54 : vector<1x16x45xbf16> to vector<16x45xbf16>
      %c2_i32_53 = arith.constant 2 : i32
      %56 = arith.muli %c2_i32_53, %arg11 : i32
      %c2_i32_54 = arith.constant 2 : i32
      %57 = arith.addi %56, %c2_i32_54 : i32
      %c0_55 = arith.constant 0 : index
      %58 = arith.index_cast %57 : i32 to index
      %c0_56 = arith.constant 0 : index
      %c0_57 = arith.constant 0 : index
      %59 = vector.load %arg1[%c0_55, %58, %c0_56, %c0_57] : memref<1x125x45x128xbf16, #tpu.memory_space<vmem>>, vector<1x1x45x128xbf16>
      %60 = vector.shape_cast %59 : vector<1x1x45x128xbf16> to vector<45x128xbf16>
      %cst_58 = arith.constant dense<0.000000e+00> : vector<16x128xf32>
      %61 = tpu.matmul %55, %60, %cst_58 {dimension_numbers = #tpu.dot_dimension_numbers<[1], [0], [0], [1], [0, 0, 1, 1], [], []>} : vector<16x45xbf16>, vector<45x128xbf16>, vector<16x128xf32> -> vector<16x128xf32>
      %62 = arith.addf %43, %61 : vector<16x128xf32>
      %c2_59 = arith.constant 2 : index
      %c0_60 = arith.constant 0 : index
      %c0_61 = arith.constant 0 : index
      %63 = vector.load %arg2[%c2_59, %c0_60, %c0_61] : memref<9x16x45xbf16, #tpu.memory_space<vmem>>, vector<1x16x45xbf16>
      %64 = vector.shape_cast %63 : vector<1x16x45xbf16> to vector<16x45xbf16>
      %c2_i32_62 = arith.constant 2 : i32
      %65 = arith.muli %c2_i32_62, %arg11 : i32
      %c2_i32_63 = arith.constant 2 : i32
      %66 = arith.addi %65, %c2_i32_63 : i32
      %c1_i32_64 = arith.constant 1 : i32
      %67 = arith.addi %66, %c1_i32_64 : i32
      %c0_65 = arith.constant 0 : index
      %68 = arith.index_cast %67 : i32 to index
      %c0_66 = arith.constant 0 : index
      %c0_67 = arith.constant 0 : index
      %69 = vector.load %arg1[%c0_65, %68, %c0_66, %c0_67] : memref<1x125x45x128xbf16, #tpu.memory_space<vmem>>, vector<1x1x45x128xbf16>
      %70 = vector.shape_cast %69 : vector<1x1x45x128xbf16> to vector<45x128xbf16>
      %cst_68 = arith.constant dense<0.000000e+00> : vector<16x128xf32>
      %71 = tpu.matmul %64, %70, %cst_68 {dimension_numbers = #tpu.dot_dimension_numbers<[1], [0], [0], [1], [0, 0, 1, 1], [], []>} : vector<16x45xbf16>, vector<45x128xbf16>, vector<16x128xf32> -> vector<16x128xf32>
      %72 = arith.addf %53, %71 : vector<16x128xf32>
      %c3 = arith.constant 3 : index
      %c0_69 = arith.constant 0 : index
      %c0_70 = arith.constant 0 : index
      %73 = vector.load %arg2[%c3, %c0_69, %c0_70] : memref<9x16x45xbf16, #tpu.memory_space<vmem>>, vector<1x16x45xbf16>
      %74 = vector.shape_cast %73 : vector<1x16x45xbf16> to vector<16x45xbf16>
      %c2_i32_71 = arith.constant 2 : i32
      %75 = arith.muli %c2_i32_71, %arg11 : i32
      %c3_i32 = arith.constant 3 : i32
      %76 = arith.addi %75, %c3_i32 : i32
      %c0_72 = arith.constant 0 : index
      %77 = arith.index_cast %76 : i32 to index
      %c0_73 = arith.constant 0 : index
      %c0_74 = arith.constant 0 : index
      %78 = vector.load %arg1[%c0_72, %77, %c0_73, %c0_74] : memref<1x125x45x128xbf16, #tpu.memory_space<vmem>>, vector<1x1x45x128xbf16>
      %79 = vector.shape_cast %78 : vector<1x1x45x128xbf16> to vector<45x128xbf16>
      %cst_75 = arith.constant dense<0.000000e+00> : vector<16x128xf32>
      %80 = tpu.matmul %74, %79, %cst_75 {dimension_numbers = #tpu.dot_dimension_numbers<[1], [0], [0], [1], [0, 0, 1, 1], [], []>} : vector<16x45xbf16>, vector<45x128xbf16>, vector<16x128xf32> -> vector<16x128xf32>
      %81 = arith.addf %62, %80 : vector<16x128xf32>
      %c3_76 = arith.constant 3 : index
      %c0_77 = arith.constant 0 : index
      %c0_78 = arith.constant 0 : index
      %82 = vector.load %arg2[%c3_76, %c0_77, %c0_78] : memref<9x16x45xbf16, #tpu.memory_space<vmem>>, vector<1x16x45xbf16>
      %83 = vector.shape_cast %82 : vector<1x16x45xbf16> to vector<16x45xbf16>
      %c2_i32_79 = arith.constant 2 : i32
      %84 = arith.muli %c2_i32_79, %arg11 : i32
      %c3_i32_80 = arith.constant 3 : i32
      %85 = arith.addi %84, %c3_i32_80 : i32
      %c1_i32_81 = arith.constant 1 : i32
      %86 = arith.addi %85, %c1_i32_81 : i32
      %c0_82 = arith.constant 0 : index
      %87 = arith.index_cast %86 : i32 to index
      %c0_83 = arith.constant 0 : index
      %c0_84 = arith.constant 0 : index
      %88 = vector.load %arg1[%c0_82, %87, %c0_83, %c0_84] : memref<1x125x45x128xbf16, #tpu.memory_space<vmem>>, vector<1x1x45x128xbf16>
      %89 = vector.shape_cast %88 : vector<1x1x45x128xbf16> to vector<45x128xbf16>
      %cst_85 = arith.constant dense<0.000000e+00> : vector<16x128xf32>
      %90 = tpu.matmul %83, %89, %cst_85 {dimension_numbers = #tpu.dot_dimension_numbers<[1], [0], [0], [1], [0, 0, 1, 1], [], []>} : vector<16x45xbf16>, vector<45x128xbf16>, vector<16x128xf32> -> vector<16x128xf32>
      %91 = arith.addf %72, %90 : vector<16x128xf32>
      %c4 = arith.constant 4 : index
      %c0_86 = arith.constant 0 : index
      %c0_87 = arith.constant 0 : index
      %92 = vector.load %arg2[%c4, %c0_86, %c0_87] : memref<9x16x45xbf16, #tpu.memory_space<vmem>>, vector<1x16x45xbf16>
      %93 = vector.shape_cast %92 : vector<1x16x45xbf16> to vector<16x45xbf16>
      %c2_i32_88 = arith.constant 2 : i32
      %94 = arith.muli %c2_i32_88, %arg11 : i32
      %c4_i32 = arith.constant 4 : i32
      %95 = arith.addi %94, %c4_i32 : i32
      %c0_89 = arith.constant 0 : index
      %96 = arith.index_cast %95 : i32 to index
      %c0_90 = arith.constant 0 : index
      %c0_91 = arith.constant 0 : index
      %97 = vector.load %arg1[%c0_89, %96, %c0_90, %c0_91] : memref<1x125x45x128xbf16, #tpu.memory_space<vmem>>, vector<1x1x45x128xbf16>
      %98 = vector.shape_cast %97 : vector<1x1x45x128xbf16> to vector<45x128xbf16>
      %cst_92 = arith.constant dense<0.000000e+00> : vector<16x128xf32>
      %99 = tpu.matmul %93, %98, %cst_92 {dimension_numbers = #tpu.dot_dimension_numbers<[1], [0], [0], [1], [0, 0, 1, 1], [], []>} : vector<16x45xbf16>, vector<45x128xbf16>, vector<16x128xf32> -> vector<16x128xf32>
      %100 = arith.addf %81, %99 : vector<16x128xf32>
      %c4_93 = arith.constant 4 : index
      %c0_94 = arith.constant 0 : index
      %c0_95 = arith.constant 0 : index
      %101 = vector.load %arg2[%c4_93, %c0_94, %c0_95] : memref<9x16x45xbf16, #tpu.memory_space<vmem>>, vector<1x16x45xbf16>
      %102 = vector.shape_cast %101 : vector<1x16x45xbf16> to vector<16x45xbf16>
      %c2_i32_96 = arith.constant 2 : i32
      %103 = arith.muli %c2_i32_96, %arg11 : i32
      %c4_i32_97 = arith.constant 4 : i32
      %104 = arith.addi %103, %c4_i32_97 : i32
      %c1_i32_98 = arith.constant 1 : i32
      %105 = arith.addi %104, %c1_i32_98 : i32
      %c0_99 = arith.constant 0 : index
      %106 = arith.index_cast %105 : i32 to index
      %c0_100 = arith.constant 0 : index
      %c0_101 = arith.constant 0 : index
      %107 = vector.load %arg1[%c0_99, %106, %c0_100, %c0_101] : memref<1x125x45x128xbf16, #tpu.memory_space<vmem>>, vector<1x1x45x128xbf16>
      %108 = vector.shape_cast %107 : vector<1x1x45x128xbf16> to vector<45x128xbf16>
      %cst_102 = arith.constant dense<0.000000e+00> : vector<16x128xf32>
      %109 = tpu.matmul %102, %108, %cst_102 {dimension_numbers = #tpu.dot_dimension_numbers<[1], [0], [0], [1], [0, 0, 1, 1], [], []>} : vector<16x45xbf16>, vector<45x128xbf16>, vector<16x128xf32> -> vector<16x128xf32>
      %110 = arith.addf %91, %109 : vector<16x128xf32>
      %c5 = arith.constant 5 : index
      %c0_103 = arith.constant 0 : index
      %c0_104 = arith.constant 0 : index
      %111 = vector.load %arg2[%c5, %c0_103, %c0_104] : memref<9x16x45xbf16, #tpu.memory_space<vmem>>, vector<1x16x45xbf16>
      %112 = vector.shape_cast %111 : vector<1x16x45xbf16> to vector<16x45xbf16>
      %c2_i32_105 = arith.constant 2 : i32
      %113 = arith.muli %c2_i32_105, %arg11 : i32
      %c5_i32 = arith.constant 5 : i32
      %114 = arith.addi %113, %c5_i32 : i32
      %c0_106 = arith.constant 0 : index
      %115 = arith.index_cast %114 : i32 to index
      %c0_107 = arith.constant 0 : index
      %c0_108 = arith.constant 0 : index
      %116 = vector.load %arg1[%c0_106, %115, %c0_107, %c0_108] : memref<1x125x45x128xbf16, #tpu.memory_space<vmem>>, vector<1x1x45x128xbf16>
      %117 = vector.shape_cast %116 : vector<1x1x45x128xbf16> to vector<45x128xbf16>
      %cst_109 = arith.constant dense<0.000000e+00> : vector<16x128xf32>
      %118 = tpu.matmul %112, %117, %cst_109 {dimension_numbers = #tpu.dot_dimension_numbers<[1], [0], [0], [1], [0, 0, 1, 1], [], []>} : vector<16x45xbf16>, vector<45x128xbf16>, vector<16x128xf32> -> vector<16x128xf32>
      %119 = arith.addf %100, %118 : vector<16x128xf32>
      %c5_110 = arith.constant 5 : index
      %c0_111 = arith.constant 0 : index
      %c0_112 = arith.constant 0 : index
      %120 = vector.load %arg2[%c5_110, %c0_111, %c0_112] : memref<9x16x45xbf16, #tpu.memory_space<vmem>>, vector<1x16x45xbf16>
      %121 = vector.shape_cast %120 : vector<1x16x45xbf16> to vector<16x45xbf16>
      %c2_i32_113 = arith.constant 2 : i32
      %122 = arith.muli %c2_i32_113, %arg11 : i32
      %c5_i32_114 = arith.constant 5 : i32
      %123 = arith.addi %122, %c5_i32_114 : i32
      %c1_i32_115 = arith.constant 1 : i32
      %124 = arith.addi %123, %c1_i32_115 : i32
      %c0_116 = arith.constant 0 : index
      %125 = arith.index_cast %124 : i32 to index
      %c0_117 = arith.constant 0 : index
      %c0_118 = arith.constant 0 : index
      %126 = vector.load %arg1[%c0_116, %125, %c0_117, %c0_118] : memref<1x125x45x128xbf16, #tpu.memory_space<vmem>>, vector<1x1x45x128xbf16>
      %127 = vector.shape_cast %126 : vector<1x1x45x128xbf16> to vector<45x128xbf16>
      %cst_119 = arith.constant dense<0.000000e+00> : vector<16x128xf32>
      %128 = tpu.matmul %121, %127, %cst_119 {dimension_numbers = #tpu.dot_dimension_numbers<[1], [0], [0], [1], [0, 0, 1, 1], [], []>} : vector<16x45xbf16>, vector<45x128xbf16>, vector<16x128xf32> -> vector<16x128xf32>
      %129 = arith.addf %110, %128 : vector<16x128xf32>
      %c6 = arith.constant 6 : index
      %c0_120 = arith.constant 0 : index
      %c0_121 = arith.constant 0 : index
      %130 = vector.load %arg2[%c6, %c0_120, %c0_121] : memref<9x16x45xbf16, #tpu.memory_space<vmem>>, vector<1x16x45xbf16>
      %131 = vector.shape_cast %130 : vector<1x16x45xbf16> to vector<16x45xbf16>
      %c2_i32_122 = arith.constant 2 : i32
      %132 = arith.muli %c2_i32_122, %arg11 : i32
      %c6_i32 = arith.constant 6 : i32
      %133 = arith.addi %132, %c6_i32 : i32
      %c0_123 = arith.constant 0 : index
      %134 = arith.index_cast %133 : i32 to index
      %c0_124 = arith.constant 0 : index
      %c0_125 = arith.constant 0 : index
      %135 = vector.load %arg1[%c0_123, %134, %c0_124, %c0_125] : memref<1x125x45x128xbf16, #tpu.memory_space<vmem>>, vector<1x1x45x128xbf16>
      %136 = vector.shape_cast %135 : vector<1x1x45x128xbf16> to vector<45x128xbf16>
      %cst_126 = arith.constant dense<0.000000e+00> : vector<16x128xf32>
      %137 = tpu.matmul %131, %136, %cst_126 {dimension_numbers = #tpu.dot_dimension_numbers<[1], [0], [0], [1], [0, 0, 1, 1], [], []>} : vector<16x45xbf16>, vector<45x128xbf16>, vector<16x128xf32> -> vector<16x128xf32>
      %138 = arith.addf %119, %137 : vector<16x128xf32>
      %c6_127 = arith.constant 6 : index
      %c0_128 = arith.constant 0 : index
      %c0_129 = arith.constant 0 : index
      %139 = vector.load %arg2[%c6_127, %c0_128, %c0_129] : memref<9x16x45xbf16, #tpu.memory_space<vmem>>, vector<1x16x45xbf16>
      %140 = vector.shape_cast %139 : vector<1x16x45xbf16> to vector<16x45xbf16>
      %c2_i32_130 = arith.constant 2 : i32
      %141 = arith.muli %c2_i32_130, %arg11 : i32
      %c6_i32_131 = arith.constant 6 : i32
      %142 = arith.addi %141, %c6_i32_131 : i32
      %c1_i32_132 = arith.constant 1 : i32
      %143 = arith.addi %142, %c1_i32_132 : i32
      %c0_133 = arith.constant 0 : index
      %144 = arith.index_cast %143 : i32 to index
      %c0_134 = arith.constant 0 : index
      %c0_135 = arith.constant 0 : index
      %145 = vector.load %arg1[%c0_133, %144, %c0_134, %c0_135] : memref<1x125x45x128xbf16, #tpu.memory_space<vmem>>, vector<1x1x45x128xbf16>
      %146 = vector.shape_cast %145 : vector<1x1x45x128xbf16> to vector<45x128xbf16>
      %cst_136 = arith.constant dense<0.000000e+00> : vector<16x128xf32>
      %147 = tpu.matmul %140, %146, %cst_136 {dimension_numbers = #tpu.dot_dimension_numbers<[1], [0], [0], [1], [0, 0, 1, 1], [], []>} : vector<16x45xbf16>, vector<45x128xbf16>, vector<16x128xf32> -> vector<16x128xf32>
      %148 = arith.addf %129, %147 : vector<16x128xf32>
      %c7 = arith.constant 7 : index
      %c0_137 = arith.constant 0 : index
      %c0_138 = arith.constant 0 : index
      %149 = vector.load %arg2[%c7, %c0_137, %c0_138] : memref<9x16x45xbf16, #tpu.memory_space<vmem>>, vector<1x16x45xbf16>
      %150 = vector.shape_cast %149 : vector<1x16x45xbf16> to vector<16x45xbf16>
      %c2_i32_139 = arith.constant 2 : i32
      %151 = arith.muli %c2_i32_139, %arg11 : i32
      %c7_i32 = arith.constant 7 : i32
      %152 = arith.addi %151, %c7_i32 : i32
      %c0_140 = arith.constant 0 : index
      %153 = arith.index_cast %152 : i32 to index
      %c0_141 = arith.constant 0 : index
      %c0_142 = arith.constant 0 : index
      %154 = vector.load %arg1[%c0_140, %153, %c0_141, %c0_142] : memref<1x125x45x128xbf16, #tpu.memory_space<vmem>>, vector<1x1x45x128xbf16>
      %155 = vector.shape_cast %154 : vector<1x1x45x128xbf16> to vector<45x128xbf16>
      %cst_143 = arith.constant dense<0.000000e+00> : vector<16x128xf32>
      %156 = tpu.matmul %150, %155, %cst_143 {dimension_numbers = #tpu.dot_dimension_numbers<[1], [0], [0], [1], [0, 0, 1, 1], [], []>} : vector<16x45xbf16>, vector<45x128xbf16>, vector<16x128xf32> -> vector<16x128xf32>
      %157 = arith.addf %138, %156 : vector<16x128xf32>
      %c7_144 = arith.constant 7 : index
      %c0_145 = arith.constant 0 : index
      %c0_146 = arith.constant 0 : index
      %158 = vector.load %arg2[%c7_144, %c0_145, %c0_146] : memref<9x16x45xbf16, #tpu.memory_space<vmem>>, vector<1x16x45xbf16>
      %159 = vector.shape_cast %158 : vector<1x16x45xbf16> to vector<16x45xbf16>
      %c2_i32_147 = arith.constant 2 : i32
      %160 = arith.muli %c2_i32_147, %arg11 : i32
      %c7_i32_148 = arith.constant 7 : i32
      %161 = arith.addi %160, %c7_i32_148 : i32
      %c1_i32_149 = arith.constant 1 : i32
      %162 = arith.addi %161, %c1_i32_149 : i32
      %c0_150 = arith.constant 0 : index
      %163 = arith.index_cast %162 : i32 to index
      %c0_151 = arith.constant 0 : index
      %c0_152 = arith.constant 0 : index
      %164 = vector.load %arg1[%c0_150, %163, %c0_151, %c0_152] : memref<1x125x45x128xbf16, #tpu.memory_space<vmem>>, vector<1x1x45x128xbf16>
      %165 = vector.shape_cast %164 : vector<1x1x45x128xbf16> to vector<45x128xbf16>
      %cst_153 = arith.constant dense<0.000000e+00> : vector<16x128xf32>
      %166 = tpu.matmul %159, %165, %cst_153 {dimension_numbers = #tpu.dot_dimension_numbers<[1], [0], [0], [1], [0, 0, 1, 1], [], []>} : vector<16x45xbf16>, vector<45x128xbf16>, vector<16x128xf32> -> vector<16x128xf32>
      %167 = arith.addf %148, %166 : vector<16x128xf32>
      %c8 = arith.constant 8 : index
      %c0_154 = arith.constant 0 : index
      %c0_155 = arith.constant 0 : index
      %168 = vector.load %arg2[%c8, %c0_154, %c0_155] : memref<9x16x45xbf16, #tpu.memory_space<vmem>>, vector<1x16x45xbf16>
      %169 = vector.shape_cast %168 : vector<1x16x45xbf16> to vector<16x45xbf16>
      %c2_i32_156 = arith.constant 2 : i32
      %170 = arith.muli %c2_i32_156, %arg11 : i32
      %c8_i32 = arith.constant 8 : i32
      %171 = arith.addi %170, %c8_i32 : i32
      %c0_157 = arith.constant 0 : index
      %172 = arith.index_cast %171 : i32 to index
      %c0_158 = arith.constant 0 : index
      %c0_159 = arith.constant 0 : index
      %173 = vector.load %arg1[%c0_157, %172, %c0_158, %c0_159] : memref<1x125x45x128xbf16, #tpu.memory_space<vmem>>, vector<1x1x45x128xbf16>
      %174 = vector.shape_cast %173 : vector<1x1x45x128xbf16> to vector<45x128xbf16>
      %cst_160 = arith.constant dense<0.000000e+00> : vector<16x128xf32>
      %175 = tpu.matmul %169, %174, %cst_160 {dimension_numbers = #tpu.dot_dimension_numbers<[1], [0], [0], [1], [0, 0, 1, 1], [], []>} : vector<16x45xbf16>, vector<45x128xbf16>, vector<16x128xf32> -> vector<16x128xf32>
      %176 = arith.addf %157, %175 : vector<16x128xf32>
      %c8_161 = arith.constant 8 : index
      %c0_162 = arith.constant 0 : index
      %c0_163 = arith.constant 0 : index
      %177 = vector.load %arg2[%c8_161, %c0_162, %c0_163] : memref<9x16x45xbf16, #tpu.memory_space<vmem>>, vector<1x16x45xbf16>
      %178 = vector.shape_cast %177 : vector<1x16x45xbf16> to vector<16x45xbf16>
      %c2_i32_164 = arith.constant 2 : i32
      %179 = arith.muli %c2_i32_164, %arg11 : i32
      %c8_i32_165 = arith.constant 8 : i32
      %180 = arith.addi %179, %c8_i32_165 : i32
      %c1_i32_166 = arith.constant 1 : i32
      %181 = arith.addi %180, %c1_i32_166 : i32
      %c0_167 = arith.constant 0 : index
      %182 = arith.index_cast %181 : i32 to index
      %c0_168 = arith.constant 0 : index
      %c0_169 = arith.constant 0 : index
      %183 = vector.load %arg1[%c0_167, %182, %c0_168, %c0_169] : memref<1x125x45x128xbf16, #tpu.memory_space<vmem>>, vector<1x1x45x128xbf16>
      %184 = vector.shape_cast %183 : vector<1x1x45x128xbf16> to vector<45x128xbf16>
      %cst_170 = arith.constant dense<0.000000e+00> : vector<16x128xf32>
      %185 = tpu.matmul %178, %184, %cst_170 {dimension_numbers = #tpu.dot_dimension_numbers<[1], [0], [0], [1], [0, 0, 1, 1], [], []>} : vector<16x45xbf16>, vector<45x128xbf16>, vector<16x128xf32> -> vector<16x128xf32>
      %186 = arith.addf %167, %185 : vector<16x128xf32>
      %187 = arith.maximumf %176, %186 : vector<16x128xf32>
      %188 = arith.addf %187, %2 : vector<16x128xf32>
      %cst_171 = arith.constant 0.000000e+00 : f32
      %189 = vector.broadcast %cst_171 : f32 to vector<16x128xf32>
      %190 = arith.maximumf %188, %189 : vector<16x128xf32>
      %191 = arith.truncf %190 : vector<16x128xf32> to vector<16x128xbf16>
      %192 = arith.index_cast %arg11 : i32 to index
      %c0_172 = arith.constant 0 : index
      %c0_173 = arith.constant 0 : index
      %193 = vector.load %arg9[%192, %c0_172, %c0_173] : memref<58x16x128xbf16, #tpu.memory_space<vmem>>, vector<1x16x128xbf16>
      %194 = vector.shape_cast %193 : vector<1x16x128xbf16> to vector<16x128xbf16>
      %195 = vector.shape_cast %191 : vector<16x128xbf16> to vector<1x16x128xbf16>
      tpu.vector_store %arg9[%192, %c0_172, %c0_173], %195 {strides = array<i32>} : memref<58x16x128xbf16, #tpu.memory_space<vmem>>, vector<1x16x128xbf16>,
    }
    %c58_i32_5 = arith.constant 58 : i32
    %c0_i32_6 = arith.constant 0 : i32
    %c25_i32 = arith.constant 25 : i32
    %10 = arith.addi %c0_i32_6, %c25_i32 : i32
    %c1_i32_7 = arith.constant 1 : i32
    scf.for %arg11 = %c0_i32_6 to %10 step %c1_i32_7  : i32 {
      %c0_17 = arith.constant 0 : index
      %c0_18 = arith.constant 0 : index
      %c0_19 = arith.constant 0 : index
      %20 = vector.load %arg4[%c0_17, %c0_18, %c0_19] : memref<9x32x16xbf16, #tpu.memory_space<vmem>>, vector<1x32x16xbf16>
      %21 = vector.shape_cast %20 : vector<1x32x16xbf16> to vector<32x16xbf16>
      %c2_i32 = arith.constant 2 : i32
      %22 = arith.muli %c2_i32, %arg11 : i32
      %23 = arith.index_cast %22 : i32 to index
      %c0_20 = arith.constant 0 : index
      %c0_21 = arith.constant 0 : index
      %24 = vector.load %arg9[%23, %c0_20, %c0_21] : memref<58x16x128xbf16, #tpu.memory_space<vmem>>, vector<1x16x128xbf16>
      %25 = vector.shape_cast %24 : vector<1x16x128xbf16> to vector<16x128xbf16>
      %cst_22 = arith.constant dense<0.000000e+00> : vector<32x128xf32>
      %26 = tpu.matmul %21, %25, %cst_22 {dimension_numbers = #tpu.dot_dimension_numbers<[1], [0], [0], [1], [0, 0, 1, 1], [], []>} : vector<32x16xbf16>, vector<16x128xbf16>, vector<32x128xf32> -> vector<32x128xf32>
      %c0_23 = arith.constant 0 : index
      %c0_24 = arith.constant 0 : index
      %c0_25 = arith.constant 0 : index
      %27 = vector.load %arg4[%c0_23, %c0_24, %c0_25] : memref<9x32x16xbf16, #tpu.memory_space<vmem>>, vector<1x32x16xbf16>
      %28 = vector.shape_cast %27 : vector<1x32x16xbf16> to vector<32x16xbf16>
      %c2_i32_26 = arith.constant 2 : i32
      %29 = arith.muli %c2_i32_26, %arg11 : i32
      %c1_i32_27 = arith.constant 1 : i32
      %30 = arith.addi %29, %c1_i32_27 : i32
      %31 = arith.index_cast %30 : i32 to index
      %c0_28 = arith.constant 0 : index
      %c0_29 = arith.constant 0 : index
      %32 = vector.load %arg9[%31, %c0_28, %c0_29] : memref<58x16x128xbf16, #tpu.memory_space<vmem>>, vector<1x16x128xbf16>
      %33 = vector.shape_cast %32 : vector<1x16x128xbf16> to vector<16x128xbf16>
      %cst_30 = arith.constant dense<0.000000e+00> : vector<32x128xf32>
      %34 = tpu.matmul %28, %33, %cst_30 {dimension_numbers = #tpu.dot_dimension_numbers<[1], [0], [0], [1], [0, 0, 1, 1], [], []>} : vector<32x16xbf16>, vector<16x128xbf16>, vector<32x128xf32> -> vector<32x128xf32>
      %c1 = arith.constant 1 : index
      %c0_31 = arith.constant 0 : index
      %c0_32 = arith.constant 0 : index
      %35 = vector.load %arg4[%c1, %c0_31, %c0_32] : memref<9x32x16xbf16, #tpu.memory_space<vmem>>, vector<1x32x16xbf16>
      %36 = vector.shape_cast %35 : vector<1x32x16xbf16> to vector<32x16xbf16>
      %c2_i32_33 = arith.constant 2 : i32
      %37 = arith.muli %c2_i32_33, %arg11 : i32
      %c1_i32_34 = arith.constant 1 : i32
      %38 = arith.addi %37, %c1_i32_34 : i32
      %39 = arith.index_cast %38 : i32 to index
      %c0_35 = arith.constant 0 : index
      %c0_36 = arith.constant 0 : index
      %40 = vector.load %arg9[%39, %c0_35, %c0_36] : memref<58x16x128xbf16, #tpu.memory_space<vmem>>, vector<1x16x128xbf16>
      %41 = vector.shape_cast %40 : vector<1x16x128xbf16> to vector<16x128xbf16>
      %cst_37 = arith.constant dense<0.000000e+00> : vector<32x128xf32>
      %42 = tpu.matmul %36, %41, %cst_37 {dimension_numbers = #tpu.dot_dimension_numbers<[1], [0], [0], [1], [0, 0, 1, 1], [], []>} : vector<32x16xbf16>, vector<16x128xbf16>, vector<32x128xf32> -> vector<32x128xf32>
      %43 = arith.addf %26, %42 : vector<32x128xf32>
      %c1_38 = arith.constant 1 : index
      %c0_39 = arith.constant 0 : index
      %c0_40 = arith.constant 0 : index
      %44 = vector.load %arg4[%c1_38, %c0_39, %c0_40] : memref<9x32x16xbf16, #tpu.memory_space<vmem>>, vector<1x32x16xbf16>
      %45 = vector.shape_cast %44 : vector<1x32x16xbf16> to vector<32x16xbf16>
      %c2_i32_41 = arith.constant 2 : i32
      %46 = arith.muli %c2_i32_41, %arg11 : i32
      %c1_i32_42 = arith.constant 1 : i32
      %47 = arith.addi %46, %c1_i32_42 : i32
      %c1_i32_43 = arith.constant 1 : i32
      %48 = arith.addi %47, %c1_i32_43 : i32
      %49 = arith.index_cast %48 : i32 to index
      %c0_44 = arith.constant 0 : index
      %c0_45 = arith.constant 0 : index
      %50 = vector.load %arg9[%49, %c0_44, %c0_45] : memref<58x16x128xbf16, #tpu.memory_space<vmem>>, vector<1x16x128xbf16>
      %51 = vector.shape_cast %50 : vector<1x16x128xbf16> to vector<16x128xbf16>
      %cst_46 = arith.constant dense<0.000000e+00> : vector<32x128xf32>
      %52 = tpu.matmul %45, %51, %cst_46 {dimension_numbers = #tpu.dot_dimension_numbers<[1], [0], [0], [1], [0, 0, 1, 1], [], []>} : vector<32x16xbf16>, vector<16x128xbf16>, vector<32x128xf32> -> vector<32x128xf32>
      %53 = arith.addf %34, %52 : vector<32x128xf32>
      %c2 = arith.constant 2 : index
      %c0_47 = arith.constant 0 : index
      %c0_48 = arith.constant 0 : index
      %54 = vector.load %arg4[%c2, %c0_47, %c0_48] : memref<9x32x16xbf16, #tpu.memory_space<vmem>>, vector<1x32x16xbf16>
      %55 = vector.shape_cast %54 : vector<1x32x16xbf16> to vector<32x16xbf16>
      %c2_i32_49 = arith.constant 2 : i32
      %56 = arith.muli %c2_i32_49, %arg11 : i32
      %c2_i32_50 = arith.constant 2 : i32
      %57 = arith.addi %56, %c2_i32_50 : i32
      %58 = arith.index_cast %57 : i32 to index
      %c0_51 = arith.constant 0 : index
      %c0_52 = arith.constant 0 : index
      %59 = vector.load %arg9[%58, %c0_51, %c0_52] : memref<58x16x128xbf16, #tpu.memory_space<vmem>>, vector<1x16x128xbf16>
      %60 = vector.shape_cast %59 : vector<1x16x128xbf16> to vector<16x128xbf16>
      %cst_53 = arith.constant dense<0.000000e+00> : vector<32x128xf32>
      %61 = tpu.matmul %55, %60, %cst_53 {dimension_numbers = #tpu.dot_dimension_numbers<[1], [0], [0], [1], [0, 0, 1, 1], [], []>} : vector<32x16xbf16>, vector<16x128xbf16>, vector<32x128xf32> -> vector<32x128xf32>
      %62 = arith.addf %43, %61 : vector<32x128xf32>
      %c2_54 = arith.constant 2 : index
      %c0_55 = arith.constant 0 : index
      %c0_56 = arith.constant 0 : index
      %63 = vector.load %arg4[%c2_54, %c0_55, %c0_56] : memref<9x32x16xbf16, #tpu.memory_space<vmem>>, vector<1x32x16xbf16>
      %64 = vector.shape_cast %63 : vector<1x32x16xbf16> to vector<32x16xbf16>
      %c2_i32_57 = arith.constant 2 : i32
      %65 = arith.muli %c2_i32_57, %arg11 : i32
      %c2_i32_58 = arith.constant 2 : i32
      %66 = arith.addi %65, %c2_i32_58 : i32
      %c1_i32_59 = arith.constant 1 : i32
      %67 = arith.addi %66, %c1_i32_59 : i32
      %68 = arith.index_cast %67 : i32 to index
      %c0_60 = arith.constant 0 : index
      %c0_61 = arith.constant 0 : index
      %69 = vector.load %arg9[%68, %c0_60, %c0_61] : memref<58x16x128xbf16, #tpu.memory_space<vmem>>, vector<1x16x128xbf16>
      %70 = vector.shape_cast %69 : vector<1x16x128xbf16> to vector<16x128xbf16>
      %cst_62 = arith.constant dense<0.000000e+00> : vector<32x128xf32>
      %71 = tpu.matmul %64, %70, %cst_62 {dimension_numbers = #tpu.dot_dimension_numbers<[1], [0], [0], [1], [0, 0, 1, 1], [], []>} : vector<32x16xbf16>, vector<16x128xbf16>, vector<32x128xf32> -> vector<32x128xf32>
      %72 = arith.addf %53, %71 : vector<32x128xf32>
      %c3 = arith.constant 3 : index
      %c0_63 = arith.constant 0 : index
      %c0_64 = arith.constant 0 : index
      %73 = vector.load %arg4[%c3, %c0_63, %c0_64] : memref<9x32x16xbf16, #tpu.memory_space<vmem>>, vector<1x32x16xbf16>
      %74 = vector.shape_cast %73 : vector<1x32x16xbf16> to vector<32x16xbf16>
      %c2_i32_65 = arith.constant 2 : i32
      %75 = arith.muli %c2_i32_65, %arg11 : i32
      %c3_i32 = arith.constant 3 : i32
      %76 = arith.addi %75, %c3_i32 : i32
      %77 = arith.index_cast %76 : i32 to index
      %c0_66 = arith.constant 0 : index
      %c0_67 = arith.constant 0 : index
      %78 = vector.load %arg9[%77, %c0_66, %c0_67] : memref<58x16x128xbf16, #tpu.memory_space<vmem>>, vector<1x16x128xbf16>
      %79 = vector.shape_cast %78 : vector<1x16x128xbf16> to vector<16x128xbf16>
      %cst_68 = arith.constant dense<0.000000e+00> : vector<32x128xf32>
      %80 = tpu.matmul %74, %79, %cst_68 {dimension_numbers = #tpu.dot_dimension_numbers<[1], [0], [0], [1], [0, 0, 1, 1], [], []>} : vector<32x16xbf16>, vector<16x128xbf16>, vector<32x128xf32> -> vector<32x128xf32>
      %81 = arith.addf %62, %80 : vector<32x128xf32>
      %c3_69 = arith.constant 3 : index
      %c0_70 = arith.constant 0 : index
      %c0_71 = arith.constant 0 : index
      %82 = vector.load %arg4[%c3_69, %c0_70, %c0_71] : memref<9x32x16xbf16, #tpu.memory_space<vmem>>, vector<1x32x16xbf16>
      %83 = vector.shape_cast %82 : vector<1x32x16xbf16> to vector<32x16xbf16>
      %c2_i32_72 = arith.constant 2 : i32
      %84 = arith.muli %c2_i32_72, %arg11 : i32
      %c3_i32_73 = arith.constant 3 : i32
      %85 = arith.addi %84, %c3_i32_73 : i32
      %c1_i32_74 = arith.constant 1 : i32
      %86 = arith.addi %85, %c1_i32_74 : i32
      %87 = arith.index_cast %86 : i32 to index
      %c0_75 = arith.constant 0 : index
      %c0_76 = arith.constant 0 : index
      %88 = vector.load %arg9[%87, %c0_75, %c0_76] : memref<58x16x128xbf16, #tpu.memory_space<vmem>>, vector<1x16x128xbf16>
      %89 = vector.shape_cast %88 : vector<1x16x128xbf16> to vector<16x128xbf16>
      %cst_77 = arith.constant dense<0.000000e+00> : vector<32x128xf32>
      %90 = tpu.matmul %83, %89, %cst_77 {dimension_numbers = #tpu.dot_dimension_numbers<[1], [0], [0], [1], [0, 0, 1, 1], [], []>} : vector<32x16xbf16>, vector<16x128xbf16>, vector<32x128xf32> -> vector<32x128xf32>
      %91 = arith.addf %72, %90 : vector<32x128xf32>
      %c4 = arith.constant 4 : index
      %c0_78 = arith.constant 0 : index
      %c0_79 = arith.constant 0 : index
      %92 = vector.load %arg4[%c4, %c0_78, %c0_79] : memref<9x32x16xbf16, #tpu.memory_space<vmem>>, vector<1x32x16xbf16>
      %93 = vector.shape_cast %92 : vector<1x32x16xbf16> to vector<32x16xbf16>
      %c2_i32_80 = arith.constant 2 : i32
      %94 = arith.muli %c2_i32_80, %arg11 : i32
      %c4_i32 = arith.constant 4 : i32
      %95 = arith.addi %94, %c4_i32 : i32
      %96 = arith.index_cast %95 : i32 to index
      %c0_81 = arith.constant 0 : index
      %c0_82 = arith.constant 0 : index
      %97 = vector.load %arg9[%96, %c0_81, %c0_82] : memref<58x16x128xbf16, #tpu.memory_space<vmem>>, vector<1x16x128xbf16>
      %98 = vector.shape_cast %97 : vector<1x16x128xbf16> to vector<16x128xbf16>
      %cst_83 = arith.constant dense<0.000000e+00> : vector<32x128xf32>
      %99 = tpu.matmul %93, %98, %cst_83 {dimension_numbers = #tpu.dot_dimension_numbers<[1], [0], [0], [1], [0, 0, 1, 1], [], []>} : vector<32x16xbf16>, vector<16x128xbf16>, vector<32x128xf32> -> vector<32x128xf32>
      %100 = arith.addf %81, %99 : vector<32x128xf32>
      %c4_84 = arith.constant 4 : index
      %c0_85 = arith.constant 0 : index
      %c0_86 = arith.constant 0 : index
      %101 = vector.load %arg4[%c4_84, %c0_85, %c0_86] : memref<9x32x16xbf16, #tpu.memory_space<vmem>>, vector<1x32x16xbf16>
      %102 = vector.shape_cast %101 : vector<1x32x16xbf16> to vector<32x16xbf16>
      %c2_i32_87 = arith.constant 2 : i32
      %103 = arith.muli %c2_i32_87, %arg11 : i32
      %c4_i32_88 = arith.constant 4 : i32
      %104 = arith.addi %103, %c4_i32_88 : i32
      %c1_i32_89 = arith.constant 1 : i32
      %105 = arith.addi %104, %c1_i32_89 : i32
      %106 = arith.index_cast %105 : i32 to index
      %c0_90 = arith.constant 0 : index
      %c0_91 = arith.constant 0 : index
      %107 = vector.load %arg9[%106, %c0_90, %c0_91] : memref<58x16x128xbf16, #tpu.memory_space<vmem>>, vector<1x16x128xbf16>
      %108 = vector.shape_cast %107 : vector<1x16x128xbf16> to vector<16x128xbf16>
      %cst_92 = arith.constant dense<0.000000e+00> : vector<32x128xf32>
      %109 = tpu.matmul %102, %108, %cst_92 {dimension_numbers = #tpu.dot_dimension_numbers<[1], [0], [0], [1], [0, 0, 1, 1], [], []>} : vector<32x16xbf16>, vector<16x128xbf16>, vector<32x128xf32> -> vector<32x128xf32>
      %110 = arith.addf %91, %109 : vector<32x128xf32>
      %c5 = arith.constant 5 : index
      %c0_93 = arith.constant 0 : index
      %c0_94 = arith.constant 0 : index
      %111 = vector.load %arg4[%c5, %c0_93, %c0_94] : memref<9x32x16xbf16, #tpu.memory_space<vmem>>, vector<1x32x16xbf16>
      %112 = vector.shape_cast %111 : vector<1x32x16xbf16> to vector<32x16xbf16>
      %c2_i32_95 = arith.constant 2 : i32
      %113 = arith.muli %c2_i32_95, %arg11 : i32
      %c5_i32 = arith.constant 5 : i32
      %114 = arith.addi %113, %c5_i32 : i32
      %115 = arith.index_cast %114 : i32 to index
      %c0_96 = arith.constant 0 : index
      %c0_97 = arith.constant 0 : index
      %116 = vector.load %arg9[%115, %c0_96, %c0_97] : memref<58x16x128xbf16, #tpu.memory_space<vmem>>, vector<1x16x128xbf16>
      %117 = vector.shape_cast %116 : vector<1x16x128xbf16> to vector<16x128xbf16>
      %cst_98 = arith.constant dense<0.000000e+00> : vector<32x128xf32>
      %118 = tpu.matmul %112, %117, %cst_98 {dimension_numbers = #tpu.dot_dimension_numbers<[1], [0], [0], [1], [0, 0, 1, 1], [], []>} : vector<32x16xbf16>, vector<16x128xbf16>, vector<32x128xf32> -> vector<32x128xf32>
      %119 = arith.addf %100, %118 : vector<32x128xf32>
      %c5_99 = arith.constant 5 : index
      %c0_100 = arith.constant 0 : index
      %c0_101 = arith.constant 0 : index
      %120 = vector.load %arg4[%c5_99, %c0_100, %c0_101] : memref<9x32x16xbf16, #tpu.memory_space<vmem>>, vector<1x32x16xbf16>
      %121 = vector.shape_cast %120 : vector<1x32x16xbf16> to vector<32x16xbf16>
      %c2_i32_102 = arith.constant 2 : i32
      %122 = arith.muli %c2_i32_102, %arg11 : i32
      %c5_i32_103 = arith.constant 5 : i32
      %123 = arith.addi %122, %c5_i32_103 : i32
      %c1_i32_104 = arith.constant 1 : i32
      %124 = arith.addi %123, %c1_i32_104 : i32
      %125 = arith.index_cast %124 : i32 to index
      %c0_105 = arith.constant 0 : index
      %c0_106 = arith.constant 0 : index
      %126 = vector.load %arg9[%125, %c0_105, %c0_106] : memref<58x16x128xbf16, #tpu.memory_space<vmem>>, vector<1x16x128xbf16>
      %127 = vector.shape_cast %126 : vector<1x16x128xbf16> to vector<16x128xbf16>
      %cst_107 = arith.constant dense<0.000000e+00> : vector<32x128xf32>
      %128 = tpu.matmul %121, %127, %cst_107 {dimension_numbers = #tpu.dot_dimension_numbers<[1], [0], [0], [1], [0, 0, 1, 1], [], []>} : vector<32x16xbf16>, vector<16x128xbf16>, vector<32x128xf32> -> vector<32x128xf32>
      %129 = arith.addf %110, %128 : vector<32x128xf32>
      %c6 = arith.constant 6 : index
      %c0_108 = arith.constant 0 : index
      %c0_109 = arith.constant 0 : index
      %130 = vector.load %arg4[%c6, %c0_108, %c0_109] : memref<9x32x16xbf16, #tpu.memory_space<vmem>>, vector<1x32x16xbf16>
      %131 = vector.shape_cast %130 : vector<1x32x16xbf16> to vector<32x16xbf16>
      %c2_i32_110 = arith.constant 2 : i32
      %132 = arith.muli %c2_i32_110, %arg11 : i32
      %c6_i32 = arith.constant 6 : i32
      %133 = arith.addi %132, %c6_i32 : i32
      %134 = arith.index_cast %133 : i32 to index
      %c0_111 = arith.constant 0 : index
      %c0_112 = arith.constant 0 : index
      %135 = vector.load %arg9[%134, %c0_111, %c0_112] : memref<58x16x128xbf16, #tpu.memory_space<vmem>>, vector<1x16x128xbf16>
      %136 = vector.shape_cast %135 : vector<1x16x128xbf16> to vector<16x128xbf16>
      %cst_113 = arith.constant dense<0.000000e+00> : vector<32x128xf32>
      %137 = tpu.matmul %131, %136, %cst_113 {dimension_numbers = #tpu.dot_dimension_numbers<[1], [0], [0], [1], [0, 0, 1, 1], [], []>} : vector<32x16xbf16>, vector<16x128xbf16>, vector<32x128xf32> -> vector<32x128xf32>
      %138 = arith.addf %119, %137 : vector<32x128xf32>
      %c6_114 = arith.constant 6 : index
      %c0_115 = arith.constant 0 : index
      %c0_116 = arith.constant 0 : index
      %139 = vector.load %arg4[%c6_114, %c0_115, %c0_116] : memref<9x32x16xbf16, #tpu.memory_space<vmem>>, vector<1x32x16xbf16>
      %140 = vector.shape_cast %139 : vector<1x32x16xbf16> to vector<32x16xbf16>
      %c2_i32_117 = arith.constant 2 : i32
      %141 = arith.muli %c2_i32_117, %arg11 : i32
      %c6_i32_118 = arith.constant 6 : i32
      %142 = arith.addi %141, %c6_i32_118 : i32
      %c1_i32_119 = arith.constant 1 : i32
      %143 = arith.addi %142, %c1_i32_119 : i32
      %144 = arith.index_cast %143 : i32 to index
      %c0_120 = arith.constant 0 : index
      %c0_121 = arith.constant 0 : index
      %145 = vector.load %arg9[%144, %c0_120, %c0_121] : memref<58x16x128xbf16, #tpu.memory_space<vmem>>, vector<1x16x128xbf16>
      %146 = vector.shape_cast %145 : vector<1x16x128xbf16> to vector<16x128xbf16>
      %cst_122 = arith.constant dense<0.000000e+00> : vector<32x128xf32>
      %147 = tpu.matmul %140, %146, %cst_122 {dimension_numbers = #tpu.dot_dimension_numbers<[1], [0], [0], [1], [0, 0, 1, 1], [], []>} : vector<32x16xbf16>, vector<16x128xbf16>, vector<32x128xf32> -> vector<32x128xf32>
      %148 = arith.addf %129, %147 : vector<32x128xf32>
      %c7 = arith.constant 7 : index
      %c0_123 = arith.constant 0 : index
      %c0_124 = arith.constant 0 : index
      %149 = vector.load %arg4[%c7, %c0_123, %c0_124] : memref<9x32x16xbf16, #tpu.memory_space<vmem>>, vector<1x32x16xbf16>
      %150 = vector.shape_cast %149 : vector<1x32x16xbf16> to vector<32x16xbf16>
      %c2_i32_125 = arith.constant 2 : i32
      %151 = arith.muli %c2_i32_125, %arg11 : i32
      %c7_i32 = arith.constant 7 : i32
      %152 = arith.addi %151, %c7_i32 : i32
      %153 = arith.index_cast %152 : i32 to index
      %c0_126 = arith.constant 0 : index
      %c0_127 = arith.constant 0 : index
      %154 = vector.load %arg9[%153, %c0_126, %c0_127] : memref<58x16x128xbf16, #tpu.memory_space<vmem>>, vector<1x16x128xbf16>
      %155 = vector.shape_cast %154 : vector<1x16x128xbf16> to vector<16x128xbf16>
      %cst_128 = arith.constant dense<0.000000e+00> : vector<32x128xf32>
      %156 = tpu.matmul %150, %155, %cst_128 {dimension_numbers = #tpu.dot_dimension_numbers<[1], [0], [0], [1], [0, 0, 1, 1], [], []>} : vector<32x16xbf16>, vector<16x128xbf16>, vector<32x128xf32> -> vector<32x128xf32>
      %157 = arith.addf %138, %156 : vector<32x128xf32>
      %c7_129 = arith.constant 7 : index
      %c0_130 = arith.constant 0 : index
      %c0_131 = arith.constant 0 : index
      %158 = vector.load %arg4[%c7_129, %c0_130, %c0_131] : memref<9x32x16xbf16, #tpu.memory_space<vmem>>, vector<1x32x16xbf16>
      %159 = vector.shape_cast %158 : vector<1x32x16xbf16> to vector<32x16xbf16>
      %c2_i32_132 = arith.constant 2 : i32
      %160 = arith.muli %c2_i32_132, %arg11 : i32
      %c7_i32_133 = arith.constant 7 : i32
      %161 = arith.addi %160, %c7_i32_133 : i32
      %c1_i32_134 = arith.constant 1 : i32
      %162 = arith.addi %161, %c1_i32_134 : i32
      %163 = arith.index_cast %162 : i32 to index
      %c0_135 = arith.constant 0 : index
      %c0_136 = arith.constant 0 : index
      %164 = vector.load %arg9[%163, %c0_135, %c0_136] : memref<58x16x128xbf16, #tpu.memory_space<vmem>>, vector<1x16x128xbf16>
      %165 = vector.shape_cast %164 : vector<1x16x128xbf16> to vector<16x128xbf16>
      %cst_137 = arith.constant dense<0.000000e+00> : vector<32x128xf32>
      %166 = tpu.matmul %159, %165, %cst_137 {dimension_numbers = #tpu.dot_dimension_numbers<[1], [0], [0], [1], [0, 0, 1, 1], [], []>} : vector<32x16xbf16>, vector<16x128xbf16>, vector<32x128xf32> -> vector<32x128xf32>
      %167 = arith.addf %148, %166 : vector<32x128xf32>
      %c8 = arith.constant 8 : index
      %c0_138 = arith.constant 0 : index
      %c0_139 = arith.constant 0 : index
      %168 = vector.load %arg4[%c8, %c0_138, %c0_139] : memref<9x32x16xbf16, #tpu.memory_space<vmem>>, vector<1x32x16xbf16>
      %169 = vector.shape_cast %168 : vector<1x32x16xbf16> to vector<32x16xbf16>
      %c2_i32_140 = arith.constant 2 : i32
      %170 = arith.muli %c2_i32_140, %arg11 : i32
      %c8_i32 = arith.constant 8 : i32
      %171 = arith.addi %170, %c8_i32 : i32
      %172 = arith.index_cast %171 : i32 to index
      %c0_141 = arith.constant 0 : index
      %c0_142 = arith.constant 0 : index
      %173 = vector.load %arg9[%172, %c0_141, %c0_142] : memref<58x16x128xbf16, #tpu.memory_space<vmem>>, vector<1x16x128xbf16>
      %174 = vector.shape_cast %173 : vector<1x16x128xbf16> to vector<16x128xbf16>
      %cst_143 = arith.constant dense<0.000000e+00> : vector<32x128xf32>
      %175 = tpu.matmul %169, %174, %cst_143 {dimension_numbers = #tpu.dot_dimension_numbers<[1], [0], [0], [1], [0, 0, 1, 1], [], []>} : vector<32x16xbf16>, vector<16x128xbf16>, vector<32x128xf32> -> vector<32x128xf32>
      %176 = arith.addf %157, %175 : vector<32x128xf32>
      %c8_144 = arith.constant 8 : index
      %c0_145 = arith.constant 0 : index
      %c0_146 = arith.constant 0 : index
      %177 = vector.load %arg4[%c8_144, %c0_145, %c0_146] : memref<9x32x16xbf16, #tpu.memory_space<vmem>>, vector<1x32x16xbf16>
      %178 = vector.shape_cast %177 : vector<1x32x16xbf16> to vector<32x16xbf16>
      %c2_i32_147 = arith.constant 2 : i32
      %179 = arith.muli %c2_i32_147, %arg11 : i32
      %c8_i32_148 = arith.constant 8 : i32
      %180 = arith.addi %179, %c8_i32_148 : i32
      %c1_i32_149 = arith.constant 1 : i32
      %181 = arith.addi %180, %c1_i32_149 : i32
      %182 = arith.index_cast %181 : i32 to index
      %c0_150 = arith.constant 0 : index
      %c0_151 = arith.constant 0 : index
      %183 = vector.load %arg9[%182, %c0_150, %c0_151] : memref<58x16x128xbf16, #tpu.memory_space<vmem>>, vector<1x16x128xbf16>
      %184 = vector.shape_cast %183 : vector<1x16x128xbf16> to vector<16x128xbf16>
      %cst_152 = arith.constant dense<0.000000e+00> : vector<32x128xf32>
      %185 = tpu.matmul %178, %184, %cst_152 {dimension_numbers = #tpu.dot_dimension_numbers<[1], [0], [0], [1], [0, 0, 1, 1], [], []>} : vector<32x16xbf16>, vector<16x128xbf16>, vector<32x128xf32> -> vector<32x128xf32>
      %186 = arith.addf %167, %185 : vector<32x128xf32>
      %187 = arith.maximumf %176, %186 : vector<32x128xf32>
      %188 = arith.addf %187, %5 : vector<32x128xf32>
      %cst_153 = arith.constant 0.000000e+00 : f32
      %189 = vector.broadcast %cst_153 : f32 to vector<32x128xf32>
      %190 = arith.maximumf %188, %189 : vector<32x128xf32>
      %c32_i32 = arith.constant 32 : i32
      %191 = arith.muli %arg11, %c32_i32 : i32
      %192 = tpu.assume_multiple %191, 32 : i32
      %193 = arith.truncf %190 : vector<32x128xf32> to vector<32x128xbf16>
      %194 = arith.index_cast %192 : i32 to index
      %c0_154 = arith.constant 0 : index
      %195 = vector.load %arg10[%194, %c0_154] : memref<800x128xbf16, #tpu.memory_space<vmem>>, vector<32x128xbf16>
      tpu.vector_store %arg10[%194, %c0_154], %193 {strides = array<i32>} : memref<800x128xbf16, #tpu.memory_space<vmem>>, vector<32x128xbf16>,
    }
    %c25_i32_8 = arith.constant 25 : i32
    %c0_9 = arith.constant 0 : index
    %c0_10 = arith.constant 0 : index
    %11 = vector.load %arg6[%c0_9, %c0_10] : memref<64x800xbf16, #tpu.memory_space<vmem>>, vector<64x800xbf16>
    %c0_11 = arith.constant 0 : index
    %c0_12 = arith.constant 0 : index
    %12 = vector.load %arg10[%c0_11, %c0_12] : memref<800x128xbf16, #tpu.memory_space<vmem>>, vector<800x128xbf16>
    %cst = arith.constant dense<0.000000e+00> : vector<64x128xf32>
    %13 = tpu.matmul %11, %12, %cst {dimension_numbers = #tpu.dot_dimension_numbers<[1], [0], [0], [1], [0, 0, 1, 1], [], []>} : vector<64x800xbf16>, vector<800x128xbf16>, vector<64x128xf32> -> vector<64x128xf32>
    %14 = arith.addf %13, %8 : vector<64x128xf32>
    %cst_13 = arith.constant 0.000000e+00 : f32
    %15 = vector.broadcast %cst_13 : f32 to vector<64x128xf32>
    %16 = arith.maximumf %14, %15 : vector<64x128xf32>
    %c0_14 = arith.constant 0 : index
    %c0_15 = arith.constant 0 : index
    %c0_16 = arith.constant 0 : index
    %17 = vector.load %arg8[%c0_14, %c0_15, %c0_16] : memref<1x64x128xf32, #tpu.memory_space<vmem>>, vector<1x64x128xf32>
    %18 = vector.shape_cast %17 : vector<1x64x128xf32> to vector<64x128xf32>
    %19 = vector.shape_cast %16 : vector<64x128xf32> to vector<1x64x128xf32>
    tpu.vector_store %arg8[%c0_14, %c0_15, %c0_16], %19 {strides = array<i32>} : memref<1x64x128xf32, #tpu.memory_space<vmem>>, vector<1x64x128xf32>,
    return
  }
  func.func @transform_0(%arg0: i32) -> (i32, i32, i32, i32) {
    %c0_i32 = arith.constant 0 : i32
    %c0_i32_0 = arith.constant 0 : i32
    %c0_i32_1 = arith.constant 0 : i32
    %c0_i32_2 = arith.constant 0 : i32
    return %arg0, %c0_i32, %c0_i32_0, %c0_i32_1 : i32, i32, i32, i32
  }
  func.func @transform_1(%arg0: i32) -> (i32, i32, i32) {
    %c0_i32 = arith.constant 0 : i32
    %c0_i32_0 = arith.constant 0 : i32
    %c0_i32_1 = arith.constant 0 : i32
    %c0_i32_2 = arith.constant 0 : i32
    return %c0_i32, %c0_i32_0, %c0_i32_1 : i32, i32, i32
  }
  func.func @transform_2(%arg0: i32) -> (i32, i32) {
    %c0_i32 = arith.constant 0 : i32
    %c0_i32_0 = arith.constant 0 : i32
    %c0_i32_1 = arith.constant 0 : i32
    return %c0_i32, %c0_i32_0 : i32, i32
  }
  func.func @transform_3(%arg0: i32) -> (i32, i32, i32) {
    %c0_i32 = arith.constant 0 : i32
    %c0_i32_0 = arith.constant 0 : i32
    %c0_i32_1 = arith.constant 0 : i32
    %c0_i32_2 = arith.constant 0 : i32
    return %c0_i32, %c0_i32_0, %c0_i32_1 : i32, i32, i32
  }
  func.func @transform_4(%arg0: i32) -> (i32, i32) {
    %c0_i32 = arith.constant 0 : i32
    %c0_i32_0 = arith.constant 0 : i32
    %c0_i32_1 = arith.constant 0 : i32
    return %c0_i32, %c0_i32_0 : i32, i32
  }
  func.func @transform_5(%arg0: i32) -> (i32, i32) {
    %c0_i32 = arith.constant 0 : i32
    %c0_i32_0 = arith.constant 0 : i32
    %c0_i32_1 = arith.constant 0 : i32
    return %c0_i32, %c0_i32_0 : i32, i32
  }
  func.func @transform_6(%arg0: i32) -> (i32, i32) {
    %c0_i32 = arith.constant 0 : i32
    %c0_i32_0 = arith.constant 0 : i32
    %c0_i32_1 = arith.constant 0 : i32
    return %c0_i32, %c0_i32_0 : i32, i32
  }
  func.func @transform_7(%arg0: i32) -> (i32, i32, i32) {
    %c0_i32 = arith.constant 0 : i32
    %c0_i32_0 = arith.constant 0 : i32
    %c0_i32_1 = arith.constant 0 : i32
    return %arg0, %c0_i32, %c0_i32_0 : i32, i32, i32
  }
}

</mosaic_0001>

<llo_original>
// kernel: network_forward.1
$region0: #{network_forward.1}
  #allocation0 [shape = 'u32[]', space=smem, size = 0x4, offset = 0x4, fixed_abs, tag = 'smem constant byte address 0x4 - core index']
  #allocation1 [shape = 'u32[72,128]{1,0:T(1,128)}', space=vmem, size = 0x9000, scoped, tag = 'internal scratch']
  #allocation2 [shape = 'bf16[58,16,128]{2,1,0:T(8,128)(2,1)}', space=vmem, size = 0x3a000, scoped, tag = 'scratch operand']
  #allocation3 [shape = 'bf16[800,128]{1,0:T(8,128)(2,1)}', space=vmem, size = 0x32000, scoped, tag = 'scratch operand']
  %s0 = inlined_call_operand.vmem [shape: bf16[1,125,45,128], index: 0, kind: input, shape index: {}]
  %s1 = inlined_call_operand.vmem [shape: bf16[9,16,45], index: 1, kind: input, shape index: {}]
  %s2 = inlined_call_operand.vmem [shape: f32[16,1], index: 2, kind: input, shape index: {}]
  %s3 = inlined_call_operand.vmem [shape: bf16[9,32,16], index: 3, kind: input, shape index: {}]
  %s4 = inlined_call_operand.vmem [shape: f32[32,1], index: 4, kind: input, shape index: {}]
  %s5 = inlined_call_operand.vmem [shape: bf16[64,800], index: 5, kind: input, shape index: {}]
  %s6 = inlined_call_operand.vmem [shape: f32[64,1], index: 6, kind: input, shape index: {}]
  %s7 = inlined_call_operand.vmem [shape: f32[1,64,128], index: 7, kind: output, shape index: {}]
  %s8 = sld [smem:[#allocation0]]
  $region52: #{network_forward.1} parent=0
    _
  %s10 = ssub.s32 1, %s8
  %s11 = scalar_select 0, %s10, %s8
  // Predicated region
  $region2: #{network_forward.1} parent=0 // pred_check
    _
  $region3: #{network_forward.1} parent=0 // pred_check_branch
    %13 = sbr.rel (0) target = $region5
  $region4: #{network_forward.1} parent=0 // pred_region
    _
  $region5: #{network_forward.1} parent=0 // pred_fallthru
    _
  // Predicated region
  $region6: #{network_forward.1} parent=0 // pred_check
    _
  $region7: #{network_forward.1} parent=0 // pred_check_branch
    %15 = sbr.rel (0) target = $region9
  $region8: #{network_forward.1} parent=0 // pred_region
    _
  $region9: #{network_forward.1} parent=0 // pred_fallthru
    _
  // Predicated region
  $region10: #{network_forward.1} parent=0 // pred_check
    _
  $region11: #{network_forward.1} parent=0 // pred_check_branch
    %17 = sbr.rel (0) target = $region13
  $region12: #{network_forward.1} parent=0 // pred_region
    _
  $region13: #{network_forward.1} parent=0 // pred_fallthru
    _
  // Predicated region
  $region14: #{network_forward.1} parent=0 // pred_check
    _
  $region15: #{network_forward.1} parent=0 // pred_check_branch
    %19 = sbr.rel (0) target = $region17
  $region16: #{network_forward.1} parent=0 // pred_region
    _
  $region17: #{network_forward.1} parent=0 // pred_fallthru
    _
  // Predicated region
  $region18: #{network_forward.1} parent=0 // pred_check
    _
  $region19: #{network_forward.1} parent=0 // pred_check_branch
    %21 = sbr.rel (0) target = $region21
  $region20: #{network_forward.1} parent=0 // pred_region
    _
  $region21: #{network_forward.1} parent=0 // pred_fallthru
    _
  // Predicated region
  $region22: #{network_forward.1} parent=0 // pred_check
    _
  $region23: #{network_forward.1} parent=0 // pred_check_branch
    %23 = sbr.rel (0) target = $region25
  $region24: #{network_forward.1} parent=0 // pred_region
    _
  $region25: #{network_forward.1} parent=0 // pred_fallthru
    _
  // Predicated region
  $region26: #{network_forward.1} parent=0 // pred_check
    _
  $region27: #{network_forward.1} parent=0 // pred_check_branch
    %25 = sbr.rel (0) target = $region29
  $region28: #{network_forward.1} parent=0 // pred_region
    _
  $region29: #{network_forward.1} parent=0 // pred_fallthru
    _
  %v27 = vld [vmem:[%s2] sm:$0xff]
  %v28 = vld [vmem:[%s2 + $0x8] sm:$0xff]
  %30 = vset.pattern.permute.xlu0 0
  %31 = vperm.xlu0 %30, %v27
  %v32 = vpop.permute.xlu0 %31
  %35 = vset.pattern.permute.xlu0 0
  %36 = vperm.xlu0 %35, %v28
  %v37 = vpop.permute.xlu0 %36
  %v39 = vld [vmem:[%s4] sm:$0xff]
  %v40 = vld [vmem:[%s4 + $0x8] sm:$0xff]
  %v41 = vld [vmem:[%s4 + $0x10] sm:$0xff]
  %v42 = vld [vmem:[%s4 + $0x18] sm:$0xff]
  %44 = vset.pattern.permute.xlu0 0
  %45 = vperm.xlu0 %44, %v39
  %v46 = vpop.permute.xlu0 %45
  %49 = vset.pattern.permute.xlu0 0
  %50 = vperm.xlu0 %49, %v40
  %v51 = vpop.permute.xlu0 %50
  %54 = vset.pattern.permute.xlu0 0
  %55 = vperm.xlu0 %54, %v41
  %v56 = vpop.permute.xlu0 %55
  %59 = vset.pattern.permute.xlu0 0
  %60 = vperm.xlu0 %59, %v42
  %v61 = vpop.permute.xlu0 %60
  %v63 = vld [vmem:[%s6] sm:$0xff]
  %v64 = vld [vmem:[%s6 + $0x8] sm:$0xff]
  %v65 = vld [vmem:[%s6 + $0x10] sm:$0xff]
  %v66 = vld [vmem:[%s6 + $0x18] sm:$0xff]
  %v67 = vld [vmem:[%s6 + $0x20] sm:$0xff]
  %v68 = vld [vmem:[%s6 + $0x28] sm:$0xff]
  %v69 = vld [vmem:[%s6 + $0x30] sm:$0xff]
  %v70 = vld [vmem:[%s6 + $0x38] sm:$0xff]
  %72 = vset.pattern.permute.xlu0 0
  %73 = vperm.xlu0 %72, %v63
  %v74 = vpop.permute.xlu0 %73
  %77 = vset.pattern.permute.xlu0 0
  %78 = vperm.xlu0 %77, %v64
  %v79 = vpop.permute.xlu0 %78
  %82 = vset.pattern.permute.xlu0 0
  %83 = vperm.xlu0 %82, %v65
  %v84 = vpop.permute.xlu0 %83
  %87 = vset.pattern.permute.xlu0 0
  %88 = vperm.xlu0 %87, %v66
  %v89 = vpop.permute.xlu0 %88
  %92 = vset.pattern.permute.xlu0 0
  %93 = vperm.xlu0 %92, %v67
  %v94 = vpop.permute.xlu0 %93
  %97 = vset.pattern.permute.xlu0 0
  %98 = vperm.xlu0 %97, %v68
  %v99 = vpop.permute.xlu0 %98
  %102 = vset.pattern.permute.xlu0 0
  %103 = vperm.xlu0 %102, %v69
  %v104 = vpop.permute.xlu0 %103
  %107 = vset.pattern.permute.xlu0 0
  %108 = vperm.xlu0 %107, %v70
  %v109 = vpop.permute.xlu0 %108
  loop: start=0, step=1, limit=58
  $region30: #{network_forward.1} parent=0 // loop_pre_header
    _
  $region31: #{network_forward.1} parent=0 // loop_header
    %s112 = sphi 0, %s116
    %p113 = scmp.ge.s32.totalorder %s112, 58
  $region32: #{network_forward.1} parent=0 // loop_header_branch
    %115 = sbr.rel (%p113) target = $region36
  $region33: #{network_forward.1} parent=0 // loop_body
    %v117 = vld [vmem:[%s1] sm:$0xf]
    %v118 = vld [vmem:[%s1 + $0x4] sm:$0xf]
    %s119 = smul.u32 %s112, 2
    %s120 = smul.u32 %s119, 6
    %s121 = smul.addr %s120, 4
    %s122 = scalar_lea.vmem %s0, %s121
    %v123 = vld [vmem:[%s122] sm:$0xf]
    %v124 = vld [vmem:[%s122 + $0x4] sm:$0xf]
    %v125 = vld [vmem:[%s122 + $0x8] sm:$0xf]
    %v126 = vld [vmem:[%s122 + $0xc] sm:$0xf]
    %v127 = vld [vmem:[%s122 + $0x10] sm:$0xf]
    %v128 = vld [vmem:[%s122 + $0x14] sm:$0x7]
    %s129 = sadd.s32 %s119, 1
    %s130 = smul.u32 %s129, 6
    %s131 = smul.addr %s130, 4
    %s132 = scalar_lea.vmem %s0, %s131
    %v133 = vld [vmem:[%s132] sm:$0xf]
    %v134 = vld [vmem:[%s132 + $0x4] sm:$0xf]
    %v135 = vld [vmem:[%s132 + $0x8] sm:$0xf]
    %v136 = vld [vmem:[%s132 + $0xc] sm:$0xf]
    %v137 = vld [vmem:[%s132 + $0x10] sm:$0xf]
    %v138 = vld [vmem:[%s132 + $0x14] sm:$0x7]
    %s139 = scalar_lea.vmem %s1, 8
    %v140 = vld [vmem:[%s139] sm:$0xf]
    %v141 = vld [vmem:[%s139 + $0x4] sm:$0xf]
    %v144 = vunpack.c.l.b16 %v140
    %v145 = vunpack.c.l.b16 %v141
    %v146 = vpack.c.b16 %v145, %v144
    %v153 = vunpack.c.l.b16 %v133
    %v154 = vunpack.c.l.b16 %v134
    %v155 = vunpack.c.l.b16 %v135
    %v156 = vunpack.c.l.b16 %v136
    %v157 = vunpack.c.l.b16 %v137
    %v158 = vunpack.c.l.b16 %v138
    %v159 = vpack.c.b16 %v154, %v153
    %v160 = vpack.c.b16 %v156, %v155
    %v161 = vpack.c.b16 %v158, %v157
    %vm164 = vcmask 367616
    %v166 = vsel %vm164, %v146, 0
    %vm168 = vcmask 1045504
    %vm169 = vcmask 1046528
    %v170 = vsel %vm168, 4294967295, 65535
    %v171 = vsel %vm169, %v170, 0
    %v173 = vand.u32 %v161, %v171
    %175 = vmatpush.bf16.msra.mxu0 0
    %176 = vmatpush.bf16.msra.mxu0 0
    %177 = vmatpush.bf16.msra.mxu0 0
    %178 = vmatpush.bf16.msra.mxu0 0
    %179 = vmatpush.bf16.msra.mxu0 0
    %180 = vmatpush.bf16.msra.mxu0 %v173
    %181 = vmatpush.bf16.msra.mxu0 %v160
    %182 = vmatpush.bf16.msra.mxu0 %v159
    %183 = vmatmul.bf16.gmra.mxu0 %v166
    %v184 = vpop.f32.mrf.mxu0
    %v185 = vadd.f32 0.0, %v184
    %v186 = vpop.f32.mrf.mxu0
    %v187 = vadd.f32 0.0, %v186
    %188 = vdwg.mxu0
    %v191 = vunpack.c.l.b16 %v117
    %v192 = vunpack.c.l.b16 %v118
    %v193 = vpack.c.b16 %v192, %v191
    %v200 = vunpack.c.l.b16 %v123
    %v201 = vunpack.c.l.b16 %v124
    %v202 = vunpack.c.l.b16 %v125
    %v203 = vunpack.c.l.b16 %v126
    %v204 = vunpack.c.l.b16 %v127
    %v205 = vunpack.c.l.b16 %v128
    %v206 = vpack.c.b16 %v201, %v200
    %v207 = vpack.c.b16 %v203, %v202
    %v208 = vpack.c.b16 %v205, %v204
    %v212 = vsel %vm164, %v193, 0
    %v215 = vand.u32 %v208, %v171
    %217 = vmatpush.bf16.msra.mxu0 0
    %218 = vmatpush.bf16.msra.mxu0 0
    %219 = vmatpush.bf16.msra.mxu0 0
    %220 = vmatpush.bf16.msra.mxu0 0
    %221 = vmatpush.bf16.msra.mxu0 0
    %222 = vmatpush.bf16.msra.mxu0 %v215
    %223 = vmatpush.bf16.msra.mxu0 %v207
    %224 = vmatpush.bf16.msra.mxu0 %v206
    %225 = vmatmul.bf16.gmra.mxu0 %v212
    %v226 = vpop.f32.mrf.mxu0
    %v227 = vadd.f32 %v185, %v226
    %v228 = vpop.f32.mrf.mxu0
    %v229 = vadd.f32 %v187, %v228
    %230 = vdwg.mxu0
    %s231 = sadd.s32 %s119, 2
    %s232 = smul.u32 %s231, 6
    %s233 = smul.addr %s232, 4
    %s234 = scalar_lea.vmem %s0, %s233
    %v235 = vld [vmem:[%s234] sm:$0xf]
    %v236 = vld [vmem:[%s234 + $0x4] sm:$0xf]
    %v237 = vld [vmem:[%s234 + $0x8] sm:$0xf]
    %v238 = vld [vmem:[%s234 + $0xc] sm:$0xf]
    %v239 = vld [vmem:[%s234 + $0x10] sm:$0xf]
    %v240 = vld [vmem:[%s234 + $0x14] sm:$0x7]
    %v247 = vunpack.c.l.b16 %v235
    %v248 = vunpack.c.l.b16 %v236
    %v249 = vunpack.c.l.b16 %v237
    %v250 = vunpack.c.l.b16 %v238
    %v251 = vunpack.c.l.b16 %v239
    %v252 = vunpack.c.l.b16 %v240
    %v253 = vpack.c.b16 %v248, %v247
    %v254 = vpack.c.b16 %v250, %v249
    %v255 = vpack.c.b16 %v252, %v251
    %v259 = vand.u32 %v255, %v171
    %261 = vmatpush.bf16.msra.mxu0 0
    %262 = vmatpush.bf16.msra.mxu0 0
    %263 = vmatpush.bf16.msra.mxu0 0
    %264 = vmatpush.bf16.msra.mxu0 0
    %265 = vmatpush.bf16.msra.mxu0 0
    %266 = vmatpush.bf16.msra.mxu0 %v259
    %267 = vmatpush.bf16.msra.mxu0 %v254
    %268 = vmatpush.bf16.msra.mxu0 %v253
    %269 = vmatmul.bf16.gmra.mxu0 %v166
    %v270 = vpop.f32.mrf.mxu0
    %v271 = vadd.f32 0.0, %v270
    %v272 = vpop.f32.mrf.mxu0
    %v273 = vadd.f32 0.0, %v272
    %274 = vdwg.mxu0
    %275 = vmatpush.bf16.msra.mxu0 0
    %276 = vmatpush.bf16.msra.mxu0 0
    %277 = vmatpush.bf16.msra.mxu0 0
    %278 = vmatpush.bf16.msra.mxu0 0
    %279 = vmatpush.bf16.msra.mxu0 0
    %280 = vmatpush.bf16.msra.mxu0 %v173
    %281 = vmatpush.bf16.msra.mxu0 %v160
    %282 = vmatpush.bf16.msra.mxu0 %v159
    %283 = vmatmul.bf16.gmra.mxu0 %v212
    %v284 = vpop.f32.mrf.mxu0
    %v285 = vadd.f32 %v271, %v284
    %v286 = vpop.f32.mrf.mxu0
    %v287 = vadd.f32 %v273, %v286
    %288 = vdwg.mxu0
    %s289 = scalar_lea.vmem %s1, 16
    %v290 = vld [vmem:[%s289] sm:$0xf]
    %v291 = vld [vmem:[%s289 + $0x4] sm:$0xf]
    %v294 = vunpack.c.l.b16 %v290
    %v295 = vunpack.c.l.b16 %v291
    %v296 = vpack.c.b16 %v295, %v294
    %v298 = vsel %vm164, %v296, 0
    %300 = vmatpush.bf16.msra.mxu0 0
    %301 = vmatpush.bf16.msra.mxu0 0
    %302 = vmatpush.bf16.msra.mxu0 0
    %303 = vmatpush.bf16.msra.mxu0 0
    %304 = vmatpush.bf16.msra.mxu0 0
    %305 = vmatpush.bf16.msra.mxu0 %v259
    %306 = vmatpush.bf16.msra.mxu0 %v254
    %307 = vmatpush.bf16.msra.mxu0 %v253
    %308 = vmatmul.bf16.gmra.mxu0 %v298
    %v309 = vpop.f32.mrf.mxu0
    %v310 = vadd.f32 0.0, %v309
    %v311 = vpop.f32.mrf.mxu0
    %v312 = vadd.f32 0.0, %v311
    %313 = vdwg.mxu0
    %v314 = vadd.f32 %v227, %v310
    %v315 = vadd.f32 %v229, %v312
    %s316 = sadd.s32 %s119, 3
    %s317 = smul.u32 %s316, 6
    %s318 = smul.addr %s317, 4
    %s319 = scalar_lea.vmem %s0, %s318
    %v320 = vld [vmem:[%s319] sm:$0xf]
    %v321 = vld [vmem:[%s319 + $0x4] sm:$0xf]
    %v322 = vld [vmem:[%s319 + $0x8] sm:$0xf]
    %v323 = vld [vmem:[%s319 + $0xc] sm:$0xf]
    %v324 = vld [vmem:[%s319 + $0x10] sm:$0xf]
    %v325 = vld [vmem:[%s319 + $0x14] sm:$0x7]
    %v332 = vunpack.c.l.b16 %v320
    %v333 = vunpack.c.l.b16 %v321
    %v334 = vunpack.c.l.b16 %v322
    %v335 = vunpack.c.l.b16 %v323
    %v336 = vunpack.c.l.b16 %v324
    %v337 = vunpack.c.l.b16 %v325
    %v338 = vpack.c.b16 %v333, %v332
    %v339 = vpack.c.b16 %v335, %v334
    %v340 = vpack.c.b16 %v337, %v336
    %v344 = vand.u32 %v340, %v171
    %346 = vmatpush.bf16.msra.mxu0 0
    %347 = vmatpush.bf16.msra.mxu0 0
    %348 = vmatpush.bf16.msra.mxu0 0
    %349 = vmatpush.bf16.msra.mxu0 0
    %350 = vmatpush.bf16.msra.mxu0 0
    %351 = vmatpush.bf16.msra.mxu0 %v344
    %352 = vmatpush.bf16.msra.mxu0 %v339
    %353 = vmatpush.bf16.msra.mxu0 %v338
    %354 = vmatmul.bf16.gmra.mxu0 %v298
    %v355 = vpop.f32.mrf.mxu0
    %v356 = vadd.f32 0.0, %v355
    %v357 = vpop.f32.mrf.mxu0
    %v358 = vadd.f32 0.0, %v357
    %359 = vdwg.mxu0
    %v360 = vadd.f32 %v285, %v356
    %v361 = vadd.f32 %v287, %v358
    %s362 = scalar_lea.vmem %s1, 24
    %v363 = vld [vmem:[%s362] sm:$0xf]
    %v364 = vld [vmem:[%s362 + $0x4] sm:$0xf]
    %v367 = vunpack.c.l.b16 %v363
    %v368 = vunpack.c.l.b16 %v364
    %v369 = vpack.c.b16 %v368, %v367
    %v371 = vsel %vm164, %v369, 0
    %373 = vmatpush.bf16.msra.mxu0 0
    %374 = vmatpush.bf16.msra.mxu0 0
    %375 = vmatpush.bf16.msra.mxu0 0
    %376 = vmatpush.bf16.msra.mxu0 0
    %377 = vmatpush.bf16.msra.mxu0 0
    %378 = vmatpush.bf16.msra.mxu0 %v344
    %379 = vmatpush.bf16.msra.mxu0 %v339
    %380 = vmatpush.bf16.msra.mxu0 %v338
    %381 = vmatmul.bf16.gmra.mxu0 %v371
    %v382 = vpop.f32.mrf.mxu0
    %v383 = vadd.f32 0.0, %v382
    %v384 = vpop.f32.mrf.mxu0
    %v385 = vadd.f32 0.0, %v384
    %386 = vdwg.mxu0
    %v387 = vadd.f32 %v314, %v383
    %v388 = vadd.f32 %v315, %v385
    %s389 = sadd.s32 %s119, 4
    %s390 = smul.u32 %s389, 6
    %s391 = smul.addr %s390, 4
    %s392 = scalar_lea.vmem %s0, %s391
    %v393 = vld [vmem:[%s392] sm:$0xf]
    %v394 = vld [vmem:[%s392 + $0x4] sm:$0xf]
    %v395 = vld [vmem:[%s392 + $0x8] sm:$0xf]
    %v396 = vld [vmem:[%s392 + $0xc] sm:$0xf]
    %v397 = vld [vmem:[%s392 + $0x10] sm:$0xf]
    %v398 = vld [vmem:[%s392 + $0x14] sm:$0x7]
    %v405 = vunpack.c.l.b16 %v393
    %v406 = vunpack.c.l.b16 %v394
    %v407 = vunpack.c.l.b16 %v395
    %v408 = vunpack.c.l.b16 %v396
    %v409 = vunpack.c.l.b16 %v397
    %v410 = vunpack.c.l.b16 %v398
    %v411 = vpack.c.b16 %v406, %v405
    %v412 = vpack.c.b16 %v408, %v407
    %v413 = vpack.c.b16 %v410, %v409
    %v417 = vand.u32 %v413, %v171
    %419 = vmatpush.bf16.msra.mxu0 0
    %420 = vmatpush.bf16.msra.mxu0 0
    %421 = vmatpush.bf16.msra.mxu0 0
    %422 = vmatpush.bf16.msra.mxu0 0
    %423 = vmatpush.bf16.msra.mxu0 0
    %424 = vmatpush.bf16.msra.mxu0 %v417
    %425 = vmatpush.bf16.msra.mxu0 %v412
    %426 = vmatpush.bf16.msra.mxu0 %v411
    %427 = vmatmul.bf16.gmra.mxu0 %v371
    %v428 = vpop.f32.mrf.mxu0
    %v429 = vadd.f32 0.0, %v428
    %v430 = vpop.f32.mrf.mxu0
    %v431 = vadd.f32 0.0, %v430
    %432 = vdwg.mxu0
    %v433 = vadd.f32 %v360, %v429
    %v434 = vadd.f32 %v361, %v431
    %s435 = scalar_lea.vmem %s1, 32
    %v436 = vld [vmem:[%s435] sm:$0xf]
    %v437 = vld [vmem:[%s435 + $0x4] sm:$0xf]
    %v440 = vunpack.c.l.b16 %v436
    %v441 = vunpack.c.l.b16 %v437
    %v442 = vpack.c.b16 %v441, %v440
    %v444 = vsel %vm164, %v442, 0
    %446 = vmatpush.bf16.msra.mxu0 0
    %447 = vmatpush.bf16.msra.mxu0 0
    %448 = vmatpush.bf16.msra.mxu0 0
    %449 = vmatpush.bf16.msra.mxu0 0
    %450 = vmatpush.bf16.msra.mxu0 0
    %451 = vmatpush.bf16.msra.mxu0 %v417
    %452 = vmatpush.bf16.msra.mxu0 %v412
    %453 = vmatpush.bf16.msra.mxu0 %v411
    %454 = vmatmul.bf16.gmra.mxu0 %v444
    %v455 = vpop.f32.mrf.mxu0
    %v456 = vadd.f32 0.0, %v455
    %v457 = vpop.f32.mrf.mxu0
    %v458 = vadd.f32 0.0, %v457
    %459 = vdwg.mxu0
    %v460 = vadd.f32 %v387, %v456
    %v461 = vadd.f32 %v388, %v458
    %s462 = sadd.s32 %s119, 5
    %s463 = smul.u32 %s462, 6
    %s464 = smul.addr %s463, 4
    %s465 = scalar_lea.vmem %s0, %s464
    %v466 = vld [vmem:[%s465] sm:$0xf]
    %v467 = vld [vmem:[%s465 + $0x4] sm:$0xf]
    %v468 = vld [vmem:[%s465 + $0x8] sm:$0xf]
    %v469 = vld [vmem:[%s465 + $0xc] sm:$0xf]
    %v470 = vld [vmem:[%s465 + $0x10] sm:$0xf]
    %v471 = vld [vmem:[%s465 + $0x14] sm:$0x7]
    %v478 = vunpack.c.l.b16 %v466
    %v479 = vunpack.c.l.b16 %v467
    %v480 = vunpack.c.l.b16 %v468
    %v481 = vunpack.c.l.b16 %v469
    %v482 = vunpack.c.l.b16 %v470
    %v483 = vunpack.c.l.b16 %v471
    %v484 = vpack.c.b16 %v479, %v478
    %v485 = vpack.c.b16 %v481, %v480
    %v486 = vpack.c.b16 %v483, %v482
    %v490 = vand.u32 %v486, %v171
    %492 = vmatpush.bf16.msra.mxu0 0
    %493 = vmatpush.bf16.msra.mxu0 0
    %494 = vmatpush.bf16.msra.mxu0 0
    %495 = vmatpush.bf16.msra.mxu0 0
    %496 = vmatpush.bf16.msra.mxu0 0
    %497 = vmatpush.bf16.msra.mxu0 %v490
    %498 = vmatpush.bf16.msra.mxu0 %v485
    %499 = vmatpush.bf16.msra.mxu0 %v484
    %500 = vmatmul.bf16.gmra.mxu0 %v444
    %v501 = vpop.f32.mrf.mxu0
    %v502 = vadd.f32 0.0, %v501
    %v503 = vpop.f32.mrf.mxu0
    %v504 = vadd.f32 0.0, %v503
    %505 = vdwg.mxu0
    %v506 = vadd.f32 %v433, %v502
    %v507 = vadd.f32 %v434, %v504
    %s508 = scalar_lea.vmem %s1, 40
    %v509 = vld [vmem:[%s508] sm:$0xf]
    %v510 = vld [vmem:[%s508 + $0x4] sm:$0xf]
    %v513 = vunpack.c.l.b16 %v509
    %v514 = vunpack.c.l.b16 %v510
    %v515 = vpack.c.b16 %v514, %v513
    %v517 = vsel %vm164, %v515, 0
    %519 = vmatpush.bf16.msra.mxu0 0
    %520 = vmatpush.bf16.msra.mxu0 0
    %521 = vmatpush.bf16.msra.mxu0 0
    %522 = vmatpush.bf16.msra.mxu0 0
    %523 = vmatpush.bf16.msra.mxu0 0
    %524 = vmatpush.bf16.msra.mxu0 %v490
    %525 = vmatpush.bf16.msra.mxu0 %v485
    %526 = vmatpush.bf16.msra.mxu0 %v484
    %527 = vmatmul.bf16.gmra.mxu0 %v517
    %v528 = vpop.f32.mrf.mxu0
    %v529 = vadd.f32 0.0, %v528
    %v530 = vpop.f32.mrf.mxu0
    %v531 = vadd.f32 0.0, %v530
    %532 = vdwg.mxu0
    %v533 = vadd.f32 %v460, %v529
    %v534 = vadd.f32 %v461, %v531
    %s535 = sadd.s32 %s119, 6
    %s536 = smul.u32 %s535, 6
    %s537 = smul.addr %s536, 4
    %s538 = scalar_lea.vmem %s0, %s537
    %v539 = vld [vmem:[%s538] sm:$0xf]
    %v540 = vld [vmem:[%s538 + $0x4] sm:$0xf]
    %v541 = vld [vmem:[%s538 + $0x8] sm:$0xf]
    %v542 = vld [vmem:[%s538 + $0xc] sm:$0xf]
    %v543 = vld [vmem:[%s538 + $0x10] sm:$0xf]
    %v544 = vld [vmem:[%s538 + $0x14] sm:$0x7]
    %v551 = vunpack.c.l.b16 %v539
    %v552 = vunpack.c.l.b16 %v540
    %v553 = vunpack.c.l.b16 %v541
    %v554 = vunpack.c.l.b16 %v542
    %v555 = vunpack.c.l.b16 %v543
    %v556 = vunpack.c.l.b16 %v544
    %v557 = vpack.c.b16 %v552, %v551
    %v558 = vpack.c.b16 %v554, %v553
    %v559 = vpack.c.b16 %v556, %v555
    %v563 = vand.u32 %v559, %v171
    %565 = vmatpush.bf16.msra.mxu0 0
    %566 = vmatpush.bf16.msra.mxu0 0
    %567 = vmatpush.bf16.msra.mxu0 0
    %568 = vmatpush.bf16.msra.mxu0 0
    %569 = vmatpush.bf16.msra.mxu0 0
    %570 = vmatpush.bf16.msra.mxu0 %v563
    %571 = vmatpush.bf16.msra.mxu0 %v558
    %572 = vmatpush.bf16.msra.mxu0 %v557
    %573 = vmatmul.bf16.gmra.mxu0 %v517
    %v574 = vpop.f32.mrf.mxu0
    %v575 = vadd.f32 0.0, %v574
    %v576 = vpop.f32.mrf.mxu0
    %v577 = vadd.f32 0.0, %v576
    %578 = vdwg.mxu0
    %v579 = vadd.f32 %v506, %v575
    %v580 = vadd.f32 %v507, %v577
    %s581 = scalar_lea.vmem %s1, 48
    %v582 = vld [vmem:[%s581] sm:$0xf]
    %v583 = vld [vmem:[%s581 + $0x4] sm:$0xf]
    %v586 = vunpack.c.l.b16 %v582
    %v587 = vunpack.c.l.b16 %v583
    %v588 = vpack.c.b16 %v587, %v586
    %v590 = vsel %vm164, %v588, 0
    %592 = vmatpush.bf16.msra.mxu0 0
    %593 = vmatpush.bf16.msra.mxu0 0
    %594 = vmatpush.bf16.msra.mxu0 0
    %595 = vmatpush.bf16.msra.mxu0 0
    %596 = vmatpush.bf16.msra.mxu0 0
    %597 = vmatpush.bf16.msra.mxu0 %v563
    %598 = vmatpush.bf16.msra.mxu0 %v558
    %599 = vmatpush.bf16.msra.mxu0 %v557
    %600 = vmatmul.bf16.gmra.mxu0 %v590
    %v601 = vpop.f32.mrf.mxu0
    %v602 = vadd.f32 0.0, %v601
    %v603 = vpop.f32.mrf.mxu0
    %v604 = vadd.f32 0.0, %v603
    %605 = vdwg.mxu0
    %v606 = vadd.f32 %v533, %v602
    %v607 = vadd.f32 %v534, %v604
    %s608 = sadd.s32 %s119, 7
    %s609 = smul.u32 %s608, 6
    %s610 = smul.addr %s609, 4
    %s611 = scalar_lea.vmem %s0, %s610
    %v612 = vld [vmem:[%s611] sm:$0xf]
    %v613 = vld [vmem:[%s611 + $0x4] sm:$0xf]
    %v614 = vld [vmem:[%s611 + $0x8] sm:$0xf]
    %v615 = vld [vmem:[%s611 + $0xc] sm:$0xf]
    %v616 = vld [vmem:[%s611 + $0x10] sm:$0xf]
    %v617 = vld [vmem:[%s611 + $0x14] sm:$0x7]
    %v624 = vunpack.c.l.b16 %v612
    %v625 = vunpack.c.l.b16 %v613
    %v626 = vunpack.c.l.b16 %v614
    %v627 = vunpack.c.l.b16 %v615
    %v628 = vunpack.c.l.b16 %v616
    %v629 = vunpack.c.l.b16 %v617
    %v630 = vpack.c.b16 %v625, %v624
    %v631 = vpack.c.b16 %v627, %v626
    %v632 = vpack.c.b16 %v629, %v628
    %v636 = vand.u32 %v632, %v171
    %638 = vmatpush.bf16.msra.mxu0 0
    %639 = vmatpush.bf16.msra.mxu0 0
    %640 = vmatpush.bf16.msra.mxu0 0
    %641 = vmatpush.bf16.msra.mxu0 0
    %642 = vmatpush.bf16.msra.mxu0 0
    %643 = vmatpush.bf16.msra.mxu0 %v636
    %644 = vmatpush.bf16.msra.mxu0 %v631
    %645 = vmatpush.bf16.msra.mxu0 %v630
    %646 = vmatmul.bf16.gmra.mxu0 %v590
    %v647 = vpop.f32.mrf.mxu0
    %v648 = vadd.f32 0.0, %v647
    %v649 = vpop.f32.mrf.mxu0
    %v650 = vadd.f32 0.0, %v649
    %651 = vdwg.mxu0
    %v652 = vadd.f32 %v579, %v648
    %v653 = vadd.f32 %v580, %v650
    %s654 = scalar_lea.vmem %s1, 56
    %v655 = vld [vmem:[%s654] sm:$0xf]
    %v656 = vld [vmem:[%s654 + $0x4] sm:$0xf]
    %v659 = vunpack.c.l.b16 %v655
    %v660 = vunpack.c.l.b16 %v656
    %v661 = vpack.c.b16 %v660, %v659
    %v663 = vsel %vm164, %v661, 0
    %665 = vmatpush.bf16.msra.mxu0 0
    %666 = vmatpush.bf16.msra.mxu0 0
    %667 = vmatpush.bf16.msra.mxu0 0
    %668 = vmatpush.bf16.msra.mxu0 0
    %669 = vmatpush.bf16.msra.mxu0 0
    %670 = vmatpush.bf16.msra.mxu0 %v636
    %671 = vmatpush.bf16.msra.mxu0 %v631
    %672 = vmatpush.bf16.msra.mxu0 %v630
    %673 = vmatmul.bf16.gmra.mxu0 %v663
    %v674 = vpop.f32.mrf.mxu0
    %v675 = vadd.f32 0.0, %v674
    %v676 = vpop.f32.mrf.mxu0
    %v677 = vadd.f32 0.0, %v676
    %678 = vdwg.mxu0
    %v679 = vadd.f32 %v606, %v675
    %v680 = vadd.f32 %v607, %v677
    %s681 = sadd.s32 %s119, 8
    %s682 = smul.u32 %s681, 6
    %s683 = smul.addr %s682, 4
    %s684 = scalar_lea.vmem %s0, %s683
    %v685 = vld [vmem:[%s684] sm:$0xf]
    %v686 = vld [vmem:[%s684 + $0x4] sm:$0xf]
    %v687 = vld [vmem:[%s684 + $0x8] sm:$0xf]
    %v688 = vld [vmem:[%s684 + $0xc] sm:$0xf]
    %v689 = vld [vmem:[%s684 + $0x10] sm:$0xf]
    %v690 = vld [vmem:[%s684 + $0x14] sm:$0x7]
    %v697 = vunpack.c.l.b16 %v685
    %v698 = vunpack.c.l.b16 %v686
    %v699 = vunpack.c.l.b16 %v687
    %v700 = vunpack.c.l.b16 %v688
    %v701 = vunpack.c.l.b16 %v689
    %v702 = vunpack.c.l.b16 %v690
    %v703 = vpack.c.b16 %v698, %v697
    %v704 = vpack.c.b16 %v700, %v699
    %v705 = vpack.c.b16 %v702, %v701
    %v709 = vand.u32 %v705, %v171
    %711 = vmatpush.bf16.msra.mxu0 0
    %712 = vmatpush.bf16.msra.mxu0 0
    %713 = vmatpush.bf16.msra.mxu0 0
    %714 = vmatpush.bf16.msra.mxu0 0
    %715 = vmatpush.bf16.msra.mxu0 0
    %716 = vmatpush.bf16.msra.mxu0 %v709
    %717 = vmatpush.bf16.msra.mxu0 %v704
    %718 = vmatpush.bf16.msra.mxu0 %v703
    %719 = vmatmul.bf16.gmra.mxu0 %v663
    %v720 = vpop.f32.mrf.mxu0
    %v721 = vadd.f32 0.0, %v720
    %v722 = vpop.f32.mrf.mxu0
    %v723 = vadd.f32 0.0, %v722
    %724 = vdwg.mxu0
    %v725 = vadd.f32 %v652, %v721
    %v726 = vadd.f32 %v653, %v723
    %s727 = scalar_lea.vmem %s1, 64
    %v728 = vld [vmem:[%s727] sm:$0xf]
    %v729 = vld [vmem:[%s727 + $0x4] sm:$0xf]
    %v732 = vunpack.c.l.b16 %v728
    %v733 = vunpack.c.l.b16 %v729
    %v734 = vpack.c.b16 %v733, %v732
    %v736 = vsel %vm164, %v734, 0
    %738 = vmatpush.bf16.msra.mxu0 0
    %739 = vmatpush.bf16.msra.mxu0 0
    %740 = vmatpush.bf16.msra.mxu0 0
    %741 = vmatpush.bf16.msra.mxu0 0
    %742 = vmatpush.bf16.msra.mxu0 0
    %743 = vmatpush.bf16.msra.mxu0 %v709
    %744 = vmatpush.bf16.msra.mxu0 %v704
    %745 = vmatpush.bf16.msra.mxu0 %v703
    %746 = vmatmul.bf16.gmra.mxu0 %v736
    %v747 = vpop.f32.mrf.mxu0
    %v748 = vadd.f32 0.0, %v747
    %v749 = vpop.f32.mrf.mxu0
    %v750 = vadd.f32 0.0, %v749
    %751 = vdwg.mxu0
    %v752 = vadd.f32 %v679, %v748
    %v753 = vadd.f32 %v680, %v750
    %s754 = sadd.s32 %s119, 9
    %s755 = smul.u32 %s754, 6
    %s756 = smul.addr %s755, 4
    %s757 = scalar_lea.vmem %s0, %s756
    %v758 = vld [vmem:[%s757] sm:$0xf]
    %v759 = vld [vmem:[%s757 + $0x4] sm:$0xf]
    %v760 = vld [vmem:[%s757 + $0x8] sm:$0xf]
    %v761 = vld [vmem:[%s757 + $0xc] sm:$0xf]
    %v762 = vld [vmem:[%s757 + $0x10] sm:$0xf]
    %v763 = vld [vmem:[%s757 + $0x14] sm:$0x7]
    %v770 = vunpack.c.l.b16 %v758
    %v771 = vunpack.c.l.b16 %v759
    %v772 = vunpack.c.l.b16 %v760
    %v773 = vunpack.c.l.b16 %v761
    %v774 = vunpack.c.l.b16 %v762
    %v775 = vunpack.c.l.b16 %v763
    %v776 = vpack.c.b16 %v771, %v770
    %v777 = vpack.c.b16 %v773, %v772
    %v778 = vpack.c.b16 %v775, %v774
    %v782 = vand.u32 %v778, %v171
    %784 = vmatpush.bf16.msra.mxu0 0
    %785 = vmatpush.bf16.msra.mxu0 0
    %786 = vmatpush.bf16.msra.mxu0 0
    %787 = vmatpush.bf16.msra.mxu0 0
    %788 = vmatpush.bf16.msra.mxu0 0
    %789 = vmatpush.bf16.msra.mxu0 %v782
    %790 = vmatpush.bf16.msra.mxu0 %v777
    %791 = vmatpush.bf16.msra.mxu0 %v776
    %792 = vmatmul.bf16.gmra.mxu0 %v736
    %v793 = vpop.f32.mrf.mxu0
    %v794 = vadd.f32 0.0, %v793
    %v795 = vpop.f32.mrf.mxu0
    %v796 = vadd.f32 0.0, %v795
    %797 = vdwg.mxu0
    %v798 = vadd.f32 %v725, %v794
    %v799 = vadd.f32 %v726, %v796
    %v800 = vmax.f32 %v752, %v798
    %v801 = vmax.f32 %v753, %v799
    %v802 = vadd.f32 %v800, %v32
    %v803 = vadd.f32 %v801, %v37
    %v804 = vmax.f32 %v802, 0.0
    %v805 = vmax.f32 %v803, 0.0
    %v806 = vpack.c.bf16 %v804, %v804
    %v807 = vpack.c.bf16 %v805, %v805
    %s808 = smul.addr %s119, 4
    %s809 = scalar_lea.vmem [#allocation2], %s808
    %810 = vst [vmem:[%s809] sm:$0xf] %v806
    %811 = vst [vmem:[%s809 + $0x4] sm:$0xf] %v807
  $region34: #{network_forward.1} parent=0 // loop_footer
    %s116 = sadd.s32 1, %s112
  $region35: #{network_forward.1} parent=0 // loop_footer_branch
    %111 = sbr.rel target = $region31
  $region36: #{network_forward.1} parent=0 // loop_exit
    _
  loop: start=0, step=1, limit=25
  $region37: #{network_forward.1} parent=0 // loop_pre_header
    _
  $region38: #{network_forward.1} parent=0 // loop_header
    %s813 = sphi 0, %s817
    %p814 = scmp.ge.s32.totalorder %s813, 25
  $region39: #{network_forward.1} parent=0 // loop_header_branch
    %816 = sbr.rel (%p814) target = $region43
  $region40: #{network_forward.1} parent=0 // loop_body
    %v818 = vld [vmem:[%s3] sm:$0xf]
    %v819 = vld [vmem:[%s3 + $0x4] sm:$0xf]
    %v820 = vld [vmem:[%s3 + $0x8] sm:$0xf]
    %v821 = vld [vmem:[%s3 + $0xc] sm:$0xf]
    %s822 = smul.u32 %s813, 2
    %s823 = smul.u32 %s822, 2
    %s824 = smul.addr %s823, 4
    %s825 = scalar_lea.vmem [#allocation2], %s824
    %v826 = vld [vmem:[%s825] sm:$0xf]
    %v827 = vld [vmem:[%s825 + $0x4] sm:$0xf]
    %s828 = sadd.s32 %s822, 1
    %s829 = smul.u32 %s828, 2
    %s830 = smul.addr %s829, 4
    %s831 = scalar_lea.vmem [#allocation2], %s830
    %v832 = vld [vmem:[%s831] sm:$0xf]
    %v833 = vld [vmem:[%s831 + $0x4] sm:$0xf]
    %s834 = scalar_lea.vmem %s3, 16
    %v835 = vld [vmem:[%s834] sm:$0xf]
    %v836 = vld [vmem:[%s834 + $0x4] sm:$0xf]
    %v837 = vld [vmem:[%s834 + $0x8] sm:$0xf]
    %v838 = vld [vmem:[%s834 + $0xc] sm:$0xf]
    %v843 = vunpack.c.l.b16 %v835
    %v844 = vunpack.c.l.b16 %v836
    %v845 = vunpack.c.l.b16 %v837
    %v846 = vunpack.c.l.b16 %v838
    %v847 = vpack.c.b16 %v844, %v843
    %v848 = vpack.c.b16 %v846, %v845
    %v851 = vunpack.c.l.b16 %v832
    %v852 = vunpack.c.l.b16 %v833
    %v853 = vpack.c.b16 %v852, %v851
    %vm855 = vcmask 130048
    %v857 = vsel %vm855, %v847, 0
    %v860 = vsel %vm855, %v848, 0
    %862 = vmatpush.bf16.msra.mxu0 0
    %863 = vmatpush.bf16.msra.mxu0 0
    %864 = vmatpush.bf16.msra.mxu0 0
    %865 = vmatpush.bf16.msra.mxu0 0
    %866 = vmatpush.bf16.msra.mxu0 0
    %867 = vmatpush.bf16.msra.mxu0 0
    %868 = vmatpush.bf16.msra.mxu0 0
    %869 = vmatpush.bf16.msra.mxu0 %v853
    %870 = vmatmul.bf16.gmra.mxu0 %v857
    %v871 = vpop.f32.mrf.mxu0
    %v872 = vadd.f32 0.0, %v871
    %v873 = vpop.f32.mrf.mxu0
    %v874 = vadd.f32 0.0, %v873
    %875 = vmatmul.bf16.gmra.mxu0 %v860
    %v876 = vpop.f32.mrf.mxu0
    %v877 = vadd.f32 0.0, %v876
    %v878 = vpop.f32.mrf.mxu0
    %v879 = vadd.f32 0.0, %v878
    %880 = vdwg.mxu0
    %v885 = vunpack.c.l.b16 %v818
    %v886 = vunpack.c.l.b16 %v819
    %v887 = vunpack.c.l.b16 %v820
    %v888 = vunpack.c.l.b16 %v821
    %v889 = vpack.c.b16 %v886, %v885
    %v890 = vpack.c.b16 %v888, %v887
    %v893 = vunpack.c.l.b16 %v826
    %v894 = vunpack.c.l.b16 %v827
    %v895 = vpack.c.b16 %v894, %v893
    %v898 = vsel %vm855, %v889, 0
    %v901 = vsel %vm855, %v890, 0
    %903 = vmatpush.bf16.msra.mxu0 0
    %904 = vmatpush.bf16.msra.mxu0 0
    %905 = vmatpush.bf16.msra.mxu0 0
    %906 = vmatpush.bf16.msra.mxu0 0
    %907 = vmatpush.bf16.msra.mxu0 0
    %908 = vmatpush.bf16.msra.mxu0 0
    %909 = vmatpush.bf16.msra.mxu0 0
    %910 = vmatpush.bf16.msra.mxu0 %v895
    %911 = vmatmul.bf16.gmra.mxu0 %v898
    %v912 = vpop.f32.mrf.mxu0
    %v913 = vadd.f32 %v872, %v912
    %v914 = vpop.f32.mrf.mxu0
    %v915 = vadd.f32 %v874, %v914
    %916 = vmatmul.bf16.gmra.mxu0 %v901
    %v917 = vpop.f32.mrf.mxu0
    %v918 = vadd.f32 %v877, %v917
    %v919 = vpop.f32.mrf.mxu0
    %v920 = vadd.f32 %v879, %v919
    %921 = vdwg.mxu0
    %s922 = sadd.s32 %s822, 2
    %s923 = smul.u32 %s922, 2
    %s924 = smul.addr %s923, 4
    %s925 = scalar_lea.vmem [#allocation2], %s924
    %v926 = vld [vmem:[%s925] sm:$0xf]
    %v927 = vld [vmem:[%s925 + $0x4] sm:$0xf]
    %v930 = vunpack.c.l.b16 %v926
    %v931 = vunpack.c.l.b16 %v927
    %v932 = vpack.c.b16 %v931, %v930
    %934 = vmatpush.bf16.msra.mxu0 0
    %935 = vmatpush.bf16.msra.mxu0 0
    %936 = vmatpush.bf16.msra.mxu0 0
    %937 = vmatpush.bf16.msra.mxu0 0
    %938 = vmatpush.bf16.msra.mxu0 0
    %939 = vmatpush.bf16.msra.mxu0 0
    %940 = vmatpush.bf16.msra.mxu0 0
    %941 = vmatpush.bf16.msra.mxu0 %v932
    %942 = vmatmul.bf16.gmra.mxu0 %v857
    %v943 = vpop.f32.mrf.mxu0
    %v944 = vadd.f32 0.0, %v943
    %v945 = vpop.f32.mrf.mxu0
    %v946 = vadd.f32 0.0, %v945
    %947 = vmatmul.bf16.gmra.mxu0 %v860
    %v948 = vpop.f32.mrf.mxu0
    %v949 = vadd.f32 0.0, %v948
    %v950 = vpop.f32.mrf.mxu0
    %v951 = vadd.f32 0.0, %v950
    %952 = vdwg.mxu0
    %953 = vmatpush.bf16.msra.mxu0 0
    %954 = vmatpush.bf16.msra.mxu0 0
    %955 = vmatpush.bf16.msra.mxu0 0
    %956 = vmatpush.bf16.msra.mxu0 0
    %957 = vmatpush.bf16.msra.mxu0 0
    %958 = vmatpush.bf16.msra.mxu0 0
    %959 = vmatpush.bf16.msra.mxu0 0
    %960 = vmatpush.bf16.msra.mxu0 %v853
    %961 = vmatmul.bf16.gmra.mxu0 %v898
    %v962 = vpop.f32.mrf.mxu0
    %v963 = vadd.f32 %v944, %v962
    %v964 = vpop.f32.mrf.mxu0
    %v965 = vadd.f32 %v946, %v964
    %966 = vmatmul.bf16.gmra.mxu0 %v901
    %v967 = vpop.f32.mrf.mxu0
    %v968 = vadd.f32 %v949, %v967
    %v969 = vpop.f32.mrf.mxu0
    %v970 = vadd.f32 %v951, %v969
    %971 = vdwg.mxu0
    %s972 = scalar_lea.vmem %s3, 32
    %v973 = vld [vmem:[%s972] sm:$0xf]
    %v974 = vld [vmem:[%s972 + $0x4] sm:$0xf]
    %v975 = vld [vmem:[%s972 + $0x8] sm:$0xf]
    %v976 = vld [vmem:[%s972 + $0xc] sm:$0xf]
    %v981 = vunpack.c.l.b16 %v973
    %v982 = vunpack.c.l.b16 %v974
    %v983 = vunpack.c.l.b16 %v975
    %v984 = vunpack.c.l.b16 %v976
    %v985 = vpack.c.b16 %v982, %v981
    %v986 = vpack.c.b16 %v984, %v983
    %v988 = vsel %vm855, %v985, 0
    %v991 = vsel %vm855, %v986, 0
    %993 = vmatpush.bf16.msra.mxu0 0
    %994 = vmatpush.bf16.msra.mxu0 0
    %995 = vmatpush.bf16.msra.mxu0 0
    %996 = vmatpush.bf16.msra.mxu0 0
    %997 = vmatpush.bf16.msra.mxu0 0
    %998 = vmatpush.bf16.msra.mxu0 0
    %999 = vmatpush.bf16.msra.mxu0 0
    %1000 = vmatpush.bf16.msra.mxu0 %v932
    %1001 = vmatmul.bf16.gmra.mxu0 %v988
    %v1002 = vpop.f32.mrf.mxu0
    %v1003 = vadd.f32 0.0, %v1002
    %v1004 = vpop.f32.mrf.mxu0
    %v1005 = vadd.f32 0.0, %v1004
    %1006 = vmatmul.bf16.gmra.mxu0 %v991
    %v1007 = vpop.f32.mrf.mxu0
    %v1008 = vadd.f32 0.0, %v1007
    %v1009 = vpop.f32.mrf.mxu0
    %v1010 = vadd.f32 0.0, %v1009
    %1011 = vdwg.mxu0
    %v1012 = vadd.f32 %v913, %v1003
    %v1013 = vadd.f32 %v915, %v1005
    %v1014 = vadd.f32 %v918, %v1008
    %v1015 = vadd.f32 %v920, %v1010
    %s1016 = sadd.s32 %s822, 3
    %s1017 = smul.u32 %s1016, 2
    %s1018 = smul.addr %s1017, 4
    %s1019 = scalar_lea.vmem [#allocation2], %s1018
    %v1020 = vld [vmem:[%s1019] sm:$0xf]
    %v1021 = vld [vmem:[%s1019 + $0x4] sm:$0xf]
    %v1024 = vunpack.c.l.b16 %v1020
    %v1025 = vunpack.c.l.b16 %v1021
    %v1026 = vpack.c.b16 %v1025, %v1024
    %1028 = vmatpush.bf16.msra.mxu0 0
    %1029 = vmatpush.bf16.msra.mxu0 0
    %1030 = vmatpush.bf16.msra.mxu0 0
    %1031 = vmatpush.bf16.msra.mxu0 0
    %1032 = vmatpush.bf16.msra.mxu0 0
    %1033 = vmatpush.bf16.msra.mxu0 0
    %1034 = vmatpush.bf16.msra.mxu0 0
    %1035 = vmatpush.bf16.msra.mxu0 %v1026
    %1036 = vmatmul.bf16.gmra.mxu0 %v988
    %v1037 = vpop.f32.mrf.mxu0
    %v1038 = vadd.f32 0.0, %v1037
    %v1039 = vpop.f32.mrf.mxu0
    %v1040 = vadd.f32 0.0, %v1039
    %1041 = vmatmul.bf16.gmra.mxu0 %v991
    %v1042 = vpop.f32.mrf.mxu0
    %v1043 = vadd.f32 0.0, %v1042
    %v1044 = vpop.f32.mrf.mxu0
    %v1045 = vadd.f32 0.0, %v1044
    %1046 = vdwg.mxu0
    %v1047 = vadd.f32 %v963, %v1038
    %v1048 = vadd.f32 %v965, %v1040
    %v1049 = vadd.f32 %v968, %v1043
    %v1050 = vadd.f32 %v970, %v1045
    %s1051 = scalar_lea.vmem %s3, 48
    %v1052 = vld [vmem:[%s1051] sm:$0xf]
    %v1053 = vld [vmem:[%s1051 + $0x4] sm:$0xf]
    %v1054 = vld [vmem:[%s1051 + $0x8] sm:$0xf]
    %v1055 = vld [vmem:[%s1051 + $0xc] sm:$0xf]
    %v1060 = vunpack.c.l.b16 %v1052
    %v1061 = vunpack.c.l.b16 %v1053
    %v1062 = vunpack.c.l.b16 %v1054
    %v1063 = vunpack.c.l.b16 %v1055
    %v1064 = vpack.c.b16 %v1061, %v1060
    %v1065 = vpack.c.b16 %v1063, %v1062
    %v1067 = vsel %vm855, %v1064, 0
    %v1070 = vsel %vm855, %v1065, 0
    %1072 = vmatpush.bf16.msra.mxu0 0
    %1073 = vmatpush.bf16.msra.mxu0 0
    %1074 = vmatpush.bf16.msra.mxu0 0
    %1075 = vmatpush.bf16.msra.mxu0 0
    %1076 = vmatpush.bf16.msra.mxu0 0
    %1077 = vmatpush.bf16.msra.mxu0 0
    %1078 = vmatpush.bf16.msra.mxu0 0
    %1079 = vmatpush.bf16.msra.mxu0 %v1026
    %1080 = vmatmul.bf16.gmra.mxu0 %v1067
    %v1081 = vpop.f32.mrf.mxu0
    %v1082 = vadd.f32 0.0, %v1081
    %v1083 = vpop.f32.mrf.mxu0
    %v1084 = vadd.f32 0.0, %v1083
    %1085 = vmatmul.bf16.gmra.mxu0 %v1070
    %v1086 = vpop.f32.mrf.mxu0
    %v1087 = vadd.f32 0.0, %v1086
    %v1088 = vpop.f32.mrf.mxu0
    %v1089 = vadd.f32 0.0, %v1088
    %1090 = vdwg.mxu0
    %v1091 = vadd.f32 %v1012, %v1082
    %v1092 = vadd.f32 %v1013, %v1084
    %v1093 = vadd.f32 %v1014, %v1087
    %v1094 = vadd.f32 %v1015, %v1089
    %s1095 = sadd.s32 %s822, 4
    %s1096 = smul.u32 %s1095, 2
    %s1097 = smul.addr %s1096, 4
    %s1098 = scalar_lea.vmem [#allocation2], %s1097
    %v1099 = vld [vmem:[%s1098] sm:$0xf]
    %v1100 = vld [vmem:[%s1098 + $0x4] sm:$0xf]
    %v1103 = vunpack.c.l.b16 %v1099
    %v1104 = vunpack.c.l.b16 %v1100
    %v1105 = vpack.c.b16 %v1104, %v1103
    %1107 = vmatpush.bf16.msra.mxu0 0
    %1108 = vmatpush.bf16.msra.mxu0 0
    %1109 = vmatpush.bf16.msra.mxu0 0
    %1110 = vmatpush.bf16.msra.mxu0 0
    %1111 = vmatpush.bf16.msra.mxu0 0
    %1112 = vmatpush.bf16.msra.mxu0 0
    %1113 = vmatpush.bf16.msra.mxu0 0
    %1114 = vmatpush.bf16.msra.mxu0 %v1105
    %1115 = vmatmul.bf16.gmra.mxu0 %v1067
    %v1116 = vpop.f32.mrf.mxu0
    %v1117 = vadd.f32 0.0, %v1116
    %v1118 = vpop.f32.mrf.mxu0
    %v1119 = vadd.f32 0.0, %v1118
    %1120 = vmatmul.bf16.gmra.mxu0 %v1070
    %v1121 = vpop.f32.mrf.mxu0
    %v1122 = vadd.f32 0.0, %v1121
    %v1123 = vpop.f32.mrf.mxu0
    %v1124 = vadd.f32 0.0, %v1123
    %1125 = vdwg.mxu0
    %v1126 = vadd.f32 %v1047, %v1117
    %v1127 = vadd.f32 %v1048, %v1119
    %v1128 = vadd.f32 %v1049, %v1122
    %v1129 = vadd.f32 %v1050, %v1124
    %s1130 = scalar_lea.vmem %s3, 64
    %v1131 = vld [vmem:[%s1130] sm:$0xf]
    %v1132 = vld [vmem:[%s1130 + $0x4] sm:$0xf]
    %v1133 = vld [vmem:[%s1130 + $0x8] sm:$0xf]
    %v1134 = vld [vmem:[%s1130 + $0xc] sm:$0xf]
    %v1139 = vunpack.c.l.b16 %v1131
    %v1140 = vunpack.c.l.b16 %v1132
    %v1141 = vunpack.c.l.b16 %v1133
    %v1142 = vunpack.c.l.b16 %v1134
    %v1143 = vpack.c.b16 %v1140, %v1139
    %v1144 = vpack.c.b16 %v1142, %v1141
    %v1146 = vsel %vm855, %v1143, 0
    %v1149 = vsel %vm855, %v1144, 0
    %1151 = vmatpush.bf16.msra.mxu0 0
    %1152 = vmatpush.bf16.msra.mxu0 0
    %1153 = vmatpush.bf16.msra.mxu0 0
    %1154 = vmatpush.bf16.msra.mxu0 0
    %1155 = vmatpush.bf16.msra.mxu0 0
    %1156 = vmatpush.bf16.msra.mxu0 0
    %1157 = vmatpush.bf16.msra.mxu0 0
    %1158 = vmatpush.bf16.msra.mxu0 %v1105
    %1159 = vmatmul.bf16.gmra.mxu0 %v1146
    %v1160 = vpop.f32.mrf.mxu0
    %v1161 = vadd.f32 0.0, %v1160
    %v1162 = vpop.f32.mrf.mxu0
    %v1163 = vadd.f32 0.0, %v1162
    %1164 = vmatmul.bf16.gmra.mxu0 %v1149
    %v1165 = vpop.f32.mrf.mxu0
    %v1166 = vadd.f32 0.0, %v1165
    %v1167 = vpop.f32.mrf.mxu0
    %v1168 = vadd.f32 0.0, %v1167
    %1169 = vdwg.mxu0
    %v1170 = vadd.f32 %v1091, %v1161
    %v1171 = vadd.f32 %v1092, %v1163
    %v1172 = vadd.f32 %v1093, %v1166
    %v1173 = vadd.f32 %v1094, %v1168
    %s1174 = sadd.s32 %s822, 5
    %s1175 = smul.u32 %s1174, 2
    %s1176 = smul.addr %s1175, 4
    %s1177 = scalar_lea.vmem [#allocation2], %s1176
    %v1178 = vld [vmem:[%s1177] sm:$0xf]
    %v1179 = vld [vmem:[%s1177 + $0x4] sm:$0xf]
    %v1182 = vunpack.c.l.b16 %v1178
    %v1183 = vunpack.c.l.b16 %v1179
    %v1184 = vpack.c.b16 %v1183, %v1182
    %1186 = vmatpush.bf16.msra.mxu0 0
    %1187 = vmatpush.bf16.msra.mxu0 0
    %1188 = vmatpush.bf16.msra.mxu0 0
    %1189 = vmatpush.bf16.msra.mxu0 0
    %1190 = vmatpush.bf16.msra.mxu0 0
    %1191 = vmatpush.bf16.msra.mxu0 0
    %1192 = vmatpush.bf16.msra.mxu0 0
    %1193 = vmatpush.bf16.msra.mxu0 %v1184
    %1194 = vmatmul.bf16.gmra.mxu0 %v1146
    %v1195 = vpop.f32.mrf.mxu0
    %v1196 = vadd.f32 0.0, %v1195
    %v1197 = vpop.f32.mrf.mxu0
    %v1198 = vadd.f32 0.0, %v1197
    %1199 = vmatmul.bf16.gmra.mxu0 %v1149
    %v1200 = vpop.f32.mrf.mxu0
    %v1201 = vadd.f32 0.0, %v1200
    %v1202 = vpop.f32.mrf.mxu0
    %v1203 = vadd.f32 0.0, %v1202
    %1204 = vdwg.mxu0
    %v1205 = vadd.f32 %v1126, %v1196
    %v1206 = vadd.f32 %v1127, %v1198
    %v1207 = vadd.f32 %v1128, %v1201
    %v1208 = vadd.f32 %v1129, %v1203
    %s1209 = scalar_lea.vmem %s3, 80
    %v1210 = vld [vmem:[%s1209] sm:$0xf]
    %v1211 = vld [vmem:[%s1209 + $0x4] sm:$0xf]
    %v1212 = vld [vmem:[%s1209 + $0x8] sm:$0xf]
    %v1213 = vld [vmem:[%s1209 + $0xc] sm:$0xf]
    %v1218 = vunpack.c.l.b16 %v1210
    %v1219 = vunpack.c.l.b16 %v1211
    %v1220 = vunpack.c.l.b16 %v1212
    %v1221 = vunpack.c.l.b16 %v1213
    %v1222 = vpack.c.b16 %v1219, %v1218
    %v1223 = vpack.c.b16 %v1221, %v1220
    %v1225 = vsel %vm855, %v1222, 0
    %v1228 = vsel %vm855, %v1223, 0
    %1230 = vmatpush.bf16.msra.mxu0 0
    %1231 = vmatpush.bf16.msra.mxu0 0
    %1232 = vmatpush.bf16.msra.mxu0 0
    %1233 = vmatpush.bf16.msra.mxu0 0
    %1234 = vmatpush.bf16.msra.mxu0 0
    %1235 = vmatpush.bf16.msra.mxu0 0
    %1236 = vmatpush.bf16.msra.mxu0 0
    %1237 = vmatpush.bf16.msra.mxu0 %v1184
    %1238 = vmatmul.bf16.gmra.mxu0 %v1225
    %v1239 = vpop.f32.mrf.mxu0
    %v1240 = vadd.f32 0.0, %v1239
    %v1241 = vpop.f32.mrf.mxu0
    %v1242 = vadd.f32 0.0, %v1241
    %1243 = vmatmul.bf16.gmra.mxu0 %v1228
    %v1244 = vpop.f32.mrf.mxu0
    %v1245 = vadd.f32 0.0, %v1244
    %v1246 = vpop.f32.mrf.mxu0
    %v1247 = vadd.f32 0.0, %v1246
    %1248 = vdwg.mxu0
    %v1249 = vadd.f32 %v1170, %v1240
    %v1250 = vadd.f32 %v1171, %v1242
    %v1251 = vadd.f32 %v1172, %v1245
    %v1252 = vadd.f32 %v1173, %v1247
    %s1253 = sadd.s32 %s822, 6
    %s1254 = smul.u32 %s1253, 2
    %s1255 = smul.addr %s1254, 4
    %s1256 = scalar_lea.vmem [#allocation2], %s1255
    %v1257 = vld [vmem:[%s1256] sm:$0xf]
    %v1258 = vld [vmem:[%s1256 + $0x4] sm:$0xf]
    %v1261 = vunpack.c.l.b16 %v1257
    %v1262 = vunpack.c.l.b16 %v1258
    %v1263 = vpack.c.b16 %v1262, %v1261
    %1265 = vmatpush.bf16.msra.mxu0 0
    %1266 = vmatpush.bf16.msra.mxu0 0
    %1267 = vmatpush.bf16.msra.mxu0 0
    %1268 = vmatpush.bf16.msra.mxu0 0
    %1269 = vmatpush.bf16.msra.mxu0 0
    %1270 = vmatpush.bf16.msra.mxu0 0
    %1271 = vmatpush.bf16.msra.mxu0 0
    %1272 = vmatpush.bf16.msra.mxu0 %v1263
    %1273 = vmatmul.bf16.gmra.mxu0 %v1225
    %v1274 = vpop.f32.mrf.mxu0
    %v1275 = vadd.f32 0.0, %v1274
    %v1276 = vpop.f32.mrf.mxu0
    %v1277 = vadd.f32 0.0, %v1276
    %1278 = vmatmul.bf16.gmra.mxu0 %v1228
    %v1279 = vpop.f32.mrf.mxu0
    %v1280 = vadd.f32 0.0, %v1279
    %v1281 = vpop.f32.mrf.mxu0
    %v1282 = vadd.f32 0.0, %v1281
    %1283 = vdwg.mxu0
    %v1284 = vadd.f32 %v1205, %v1275
    %v1285 = vadd.f32 %v1206, %v1277
    %v1286 = vadd.f32 %v1207, %v1280
    %v1287 = vadd.f32 %v1208, %v1282
    %s1288 = scalar_lea.vmem %s3, 96
    %v1289 = vld [vmem:[%s1288] sm:$0xf]
    %v1290 = vld [vmem:[%s1288 + $0x4] sm:$0xf]
    %v1291 = vld [vmem:[%s1288 + $0x8] sm:$0xf]
    %v1292 = vld [vmem:[%s1288 + $0xc] sm:$0xf]
    %v1297 = vunpack.c.l.b16 %v1289
    %v1298 = vunpack.c.l.b16 %v1290
    %v1299 = vunpack.c.l.b16 %v1291
    %v1300 = vunpack.c.l.b16 %v1292
    %v1301 = vpack.c.b16 %v1298, %v1297
    %v1302 = vpack.c.b16 %v1300, %v1299
    %v1304 = vsel %vm855, %v1301, 0
    %v1307 = vsel %vm855, %v1302, 0
    %1309 = vmatpush.bf16.msra.mxu0 0
    %1310 = vmatpush.bf16.msra.mxu0 0
    %1311 = vmatpush.bf16.msra.mxu0 0
    %1312 = vmatpush.bf16.msra.mxu0 0
    %1313 = vmatpush.bf16.msra.mxu0 0
    %1314 = vmatpush.bf16.msra.mxu0 0
    %1315 = vmatpush.bf16.msra.mxu0 0
    %1316 = vmatpush.bf16.msra.mxu0 %v1263
    %1317 = vmatmul.bf16.gmra.mxu0 %v1304
    %v1318 = vpop.f32.mrf.mxu0
    %v1319 = vadd.f32 0.0, %v1318
    %v1320 = vpop.f32.mrf.mxu0
    %v1321 = vadd.f32 0.0, %v1320
    %1322 = vmatmul.bf16.gmra.mxu0 %v1307
    %v1323 = vpop.f32.mrf.mxu0
    %v1324 = vadd.f32 0.0, %v1323
    %v1325 = vpop.f32.mrf.mxu0
    %v1326 = vadd.f32 0.0, %v1325
    %1327 = vdwg.mxu0
    %v1328 = vadd.f32 %v1249, %v1319
    %v1329 = vadd.f32 %v1250, %v1321
    %v1330 = vadd.f32 %v1251, %v1324
    %v1331 = vadd.f32 %v1252, %v1326
    %s1332 = sadd.s32 %s822, 7
    %s1333 = smul.u32 %s1332, 2
    %s1334 = smul.addr %s1333, 4
    %s1335 = scalar_lea.vmem [#allocation2], %s1334
    %v1336 = vld [vmem:[%s1335] sm:$0xf]
    %v1337 = vld [vmem:[%s1335 + $0x4] sm:$0xf]
    %v1340 = vunpack.c.l.b16 %v1336
    %v1341 = vunpack.c.l.b16 %v1337
    %v1342 = vpack.c.b16 %v1341, %v1340
    %1344 = vmatpush.bf16.msra.mxu0 0
    %1345 = vmatpush.bf16.msra.mxu0 0
    %1346 = vmatpush.bf16.msra.mxu0 0
    %1347 = vmatpush.bf16.msra.mxu0 0
    %1348 = vmatpush.bf16.msra.mxu0 0
    %1349 = vmatpush.bf16.msra.mxu0 0
    %1350 = vmatpush.bf16.msra.mxu0 0
    %1351 = vmatpush.bf16.msra.mxu0 %v1342
    %1352 = vmatmul.bf16.gmra.mxu0 %v1304
    %v1353 = vpop.f32.mrf.mxu0
    %v1354 = vadd.f32 0.0, %v1353
    %v1355 = vpop.f32.mrf.mxu0
    %v1356 = vadd.f32 0.0, %v1355
    %1357 = vmatmul.bf16.gmra.mxu0 %v1307
    %v1358 = vpop.f32.mrf.mxu0
    %v1359 = vadd.f32 0.0, %v1358
    %v1360 = vpop.f32.mrf.mxu0
    %v1361 = vadd.f32 0.0, %v1360
    %1362 = vdwg.mxu0
    %v1363 = vadd.f32 %v1284, %v1354
    %v1364 = vadd.f32 %v1285, %v1356
    %v1365 = vadd.f32 %v1286, %v1359
    %v1366 = vadd.f32 %v1287, %v1361
    %s1367 = scalar_lea.vmem %s3, 112
    %v1368 = vld [vmem:[%s1367] sm:$0xf]
    %v1369 = vld [vmem:[%s1367 + $0x4] sm:$0xf]
    %v1370 = vld [vmem:[%s1367 + $0x8] sm:$0xf]
    %v1371 = vld [vmem:[%s1367 + $0xc] sm:$0xf]
    %v1376 = vunpack.c.l.b16 %v1368
    %v1377 = vunpack.c.l.b16 %v1369
    %v1378 = vunpack.c.l.b16 %v1370
    %v1379 = vunpack.c.l.b16 %v1371
    %v1380 = vpack.c.b16 %v1377, %v1376
    %v1381 = vpack.c.b16 %v1379, %v1378
    %v1383 = vsel %vm855, %v1380, 0
    %v1386 = vsel %vm855, %v1381, 0
    %1388 = vmatpush.bf16.msra.mxu0 0
    %1389 = vmatpush.bf16.msra.mxu0 0
    %1390 = vmatpush.bf16.msra.mxu0 0
    %1391 = vmatpush.bf16.msra.mxu0 0
    %1392 = vmatpush.bf16.msra.mxu0 0
    %1393 = vmatpush.bf16.msra.mxu0 0
    %1394 = vmatpush.bf16.msra.mxu0 0
    %1395 = vmatpush.bf16.msra.mxu0 %v1342
    %1396 = vmatmul.bf16.gmra.mxu0 %v1383
    %v1397 = vpop.f32.mrf.mxu0
    %v1398 = vadd.f32 0.0, %v1397
    %v1399 = vpop.f32.mrf.mxu0
    %v1400 = vadd.f32 0.0, %v1399
    %1401 = vmatmul.bf16.gmra.mxu0 %v1386
    %v1402 = vpop.f32.mrf.mxu0
    %v1403 = vadd.f32 0.0, %v1402
    %v1404 = vpop.f32.mrf.mxu0
    %v1405 = vadd.f32 0.0, %v1404
    %1406 = vdwg.mxu0
    %v1407 = vadd.f32 %v1328, %v1398
    %v1408 = vadd.f32 %v1329, %v1400
    %v1409 = vadd.f32 %v1330, %v1403
    %v1410 = vadd.f32 %v1331, %v1405
    %s1411 = sadd.s32 %s822, 8
    %s1412 = smul.u32 %s1411, 2
    %s1413 = smul.addr %s1412, 4
    %s1414 = scalar_lea.vmem [#allocation2], %s1413
    %v1415 = vld [vmem:[%s1414] sm:$0xf]
    %v1416 = vld [vmem:[%s1414 + $0x4] sm:$0xf]
    %v1419 = vunpack.c.l.b16 %v1415
    %v1420 = vunpack.c.l.b16 %v1416
    %v1421 = vpack.c.b16 %v1420, %v1419
    %1423 = vmatpush.bf16.msra.mxu0 0
    %1424 = vmatpush.bf16.msra.mxu0 0
    %1425 = vmatpush.bf16.msra.mxu0 0
    %1426 = vmatpush.bf16.msra.mxu0 0
    %1427 = vmatpush.bf16.msra.mxu0 0
    %1428 = vmatpush.bf16.msra.mxu0 0
    %1429 = vmatpush.bf16.msra.mxu0 0
    %1430 = vmatpush.bf16.msra.mxu0 %v1421
    %1431 = vmatmul.bf16.gmra.mxu0 %v1383
    %v1432 = vpop.f32.mrf.mxu0
    %v1433 = vadd.f32 0.0, %v1432
    %v1434 = vpop.f32.mrf.mxu0
    %v1435 = vadd.f32 0.0, %v1434
    %1436 = vmatmul.bf16.gmra.mxu0 %v1386
    %v1437 = vpop.f32.mrf.mxu0
    %v1438 = vadd.f32 0.0, %v1437
    %v1439 = vpop.f32.mrf.mxu0
    %v1440 = vadd.f32 0.0, %v1439
    %1441 = vdwg.mxu0
    %v1442 = vadd.f32 %v1363, %v1433
    %v1443 = vadd.f32 %v1364, %v1435
    %v1444 = vadd.f32 %v1365, %v1438
    %v1445 = vadd.f32 %v1366, %v1440
    %s1446 = scalar_lea.vmem %s3, 128
    %v1447 = vld [vmem:[%s1446] sm:$0xf]
    %v1448 = vld [vmem:[%s1446 + $0x4] sm:$0xf]
    %v1449 = vld [vmem:[%s1446 + $0x8] sm:$0xf]
    %v1450 = vld [vmem:[%s1446 + $0xc] sm:$0xf]
    %v1455 = vunpack.c.l.b16 %v1447
    %v1456 = vunpack.c.l.b16 %v1448
    %v1457 = vunpack.c.l.b16 %v1449
    %v1458 = vunpack.c.l.b16 %v1450
    %v1459 = vpack.c.b16 %v1456, %v1455
    %v1460 = vpack.c.b16 %v1458, %v1457
    %v1462 = vsel %vm855, %v1459, 0
    %v1465 = vsel %vm855, %v1460, 0
    %1467 = vmatpush.bf16.msra.mxu0 0
    %1468 = vmatpush.bf16.msra.mxu0 0
    %1469 = vmatpush.bf16.msra.mxu0 0
    %1470 = vmatpush.bf16.msra.mxu0 0
    %1471 = vmatpush.bf16.msra.mxu0 0
    %1472 = vmatpush.bf16.msra.mxu0 0
    %1473 = vmatpush.bf16.msra.mxu0 0
    %1474 = vmatpush.bf16.msra.mxu0 %v1421
    %1475 = vmatmul.bf16.gmra.mxu0 %v1462
    %v1476 = vpop.f32.mrf.mxu0
    %v1477 = vadd.f32 0.0, %v1476
    %v1478 = vpop.f32.mrf.mxu0
    %v1479 = vadd.f32 0.0, %v1478
    %1480 = vmatmul.bf16.gmra.mxu0 %v1465
    %v1481 = vpop.f32.mrf.mxu0
    %v1482 = vadd.f32 0.0, %v1481
    %v1483 = vpop.f32.mrf.mxu0
    %v1484 = vadd.f32 0.0, %v1483
    %1485 = vdwg.mxu0
    %v1486 = vadd.f32 %v1407, %v1477
    %v1487 = vadd.f32 %v1408, %v1479
    %v1488 = vadd.f32 %v1409, %v1482
    %v1489 = vadd.f32 %v1410, %v1484
    %s1490 = sadd.s32 %s822, 9
    %s1491 = smul.u32 %s1490, 2
    %s1492 = smul.addr %s1491, 4
    %s1493 = scalar_lea.vmem [#allocation2], %s1492
    %v1494 = vld [vmem:[%s1493] sm:$0xf]
    %v1495 = vld [vmem:[%s1493 + $0x4] sm:$0xf]
    %v1498 = vunpack.c.l.b16 %v1494
    %v1499 = vunpack.c.l.b16 %v1495
    %v1500 = vpack.c.b16 %v1499, %v1498
    %1502 = vmatpush.bf16.msra.mxu0 0
    %1503 = vmatpush.bf16.msra.mxu0 0
    %1504 = vmatpush.bf16.msra.mxu0 0
    %1505 = vmatpush.bf16.msra.mxu0 0
    %1506 = vmatpush.bf16.msra.mxu0 0
    %1507 = vmatpush.bf16.msra.mxu0 0
    %1508 = vmatpush.bf16.msra.mxu0 0
    %1509 = vmatpush.bf16.msra.mxu0 %v1500
    %1510 = vmatmul.bf16.gmra.mxu0 %v1462
    %v1511 = vpop.f32.mrf.mxu0
    %v1512 = vadd.f32 0.0, %v1511
    %v1513 = vpop.f32.mrf.mxu0
    %v1514 = vadd.f32 0.0, %v1513
    %1515 = vmatmul.bf16.gmra.mxu0 %v1465
    %v1516 = vpop.f32.mrf.mxu0
    %v1517 = vadd.f32 0.0, %v1516
    %v1518 = vpop.f32.mrf.mxu0
    %v1519 = vadd.f32 0.0, %v1518
    %1520 = vdwg.mxu0
    %v1521 = vadd.f32 %v1442, %v1512
    %v1522 = vadd.f32 %v1443, %v1514
    %v1523 = vadd.f32 %v1444, %v1517
    %v1524 = vadd.f32 %v1445, %v1519
    %v1525 = vmax.f32 %v1486, %v1521
    %v1526 = vmax.f32 %v1487, %v1522
    %v1527 = vmax.f32 %v1488, %v1523
    %v1528 = vmax.f32 %v1489, %v1524
    %v1529 = vadd.f32 %v1525, %v46
    %v1530 = vadd.f32 %v1526, %v51
    %v1531 = vadd.f32 %v1527, %v56
    %v1532 = vadd.f32 %v1528, %v61
    %v1533 = vmax.f32 %v1529, 0.0
    %v1534 = vmax.f32 %v1530, 0.0
    %v1535 = vmax.f32 %v1531, 0.0
    %v1536 = vmax.f32 %v1532, 0.0
    %s1537 = smul.u32 %s813, 32
    %v1538 = vpack.c.bf16 %v1533, %v1533
    %v1539 = vpack.c.bf16 %v1534, %v1534
    %v1540 = vpack.c.bf16 %v1535, %v1535
    %v1541 = vpack.c.bf16 %v1536, %v1536
    %s1542 = sshra.s32 %s1537, 3
    %s1543 = sand.u32 %s1537, 7
    %s1544 = smul.addr %s1542, 4
    %s1545 = scalar_lea.vmem [#allocation3], %s1544
    %1546 = vst [vmem:[%s1545] sm:$0xf] %v1538
    %1547 = vst [vmem:[%s1545 + $0x4] sm:$0xf] %v1539
    %1548 = vst [vmem:[%s1545 + $0x8] sm:$0xf] %v1540
    %1549 = vst [vmem:[%s1545 + $0xc] sm:$0xf] %v1541
  $region41: #{network_forward.1} parent=0 // loop_footer
    %s817 = sadd.s32 1, %s813
  $region42: #{network_forward.1} parent=0 // loop_footer_branch
    %812 = sbr.rel target = $region38
  $region43: #{network_forward.1} parent=0 // loop_exit
    _
  %v1550 = vld [vmem:[%s5] sm:$0xff]
  %v1551 = vld [vmem:[%s5 + $0x8] sm:$0xff]
  %v1552 = vld [vmem:[%s5 + $0x10] sm:$0xff]
  %v1553 = vld [vmem:[%s5 + $0x18] sm:$0xf]
  %v1554 = vld [vmem:[%s5 + $0x1c] sm:$0xff]
  %v1555 = vld [vmem:[%s5 + $0x24] sm:$0xff]
  %v1556 = vld [vmem:[%s5 + $0x2c] sm:$0xff]
  %v1557 = vld [vmem:[%s5 + $0x34] sm:$0xf]
  %v1558 = vld [vmem:[%s5 + $0x38] sm:$0xff]
  %v1559 = vld [vmem:[%s5 + $0x40] sm:$0xff]
  %v1560 = vld [vmem:[%s5 + $0x48] sm:$0xff]
  %v1561 = vld [vmem:[%s5 + $0x50] sm:$0xf]
  %v1562 = vld [vmem:[%s5 + $0x54] sm:$0xff]
  %v1563 = vld [vmem:[%s5 + $0x5c] sm:$0xff]
  %v1564 = vld [vmem:[%s5 + $0x64] sm:$0xff]
  %v1565 = vld [vmem:[%s5 + $0x6c] sm:$0xf]
  %v1566 = vld [vmem:[%s5 + $0x70] sm:$0xff]
  %v1567 = vld [vmem:[%s5 + $0x78] sm:$0xff]
  %v1568 = vld [vmem:[%s5 + $0x80] sm:$0xff]
  %v1569 = vld [vmem:[%s5 + $0x88] sm:$0xf]
  %v1570 = vld [vmem:[%s5 + $0x8c] sm:$0xff]
  %v1571 = vld [vmem:[%s5 + $0x94] sm:$0xff]
  %v1572 = vld [vmem:[%s5 + $0x9c] sm:$0xff]
  %v1573 = vld [vmem:[%s5 + $0xa4] sm:$0xf]
  %v1574 = vld [vmem:[%s5 + $0xa8] sm:$0xff]
  %v1575 = vld [vmem:[%s5 + $0xb0] sm:$0xff]
  %v1576 = vld [vmem:[%s5 + $0xb8] sm:$0xff]
  %v1577 = vld [vmem:[%s5 + $0xc0] sm:$0xf]
  %v1578 = vld [vmem:[%s5 + $0xc4] sm:$0xff]
  %v1579 = vld [vmem:[%s5 + $0xcc] sm:$0xff]
  %v1580 = vld [vmem:[%s5 + $0xd4] sm:$0xff]
  %v1581 = vld [vmem:[%s5 + $0xdc] sm:$0xf]
  %v1582 = vld [vmem:[#allocation3] sm:$0xf]
  %v1583 = vld [vmem:[#allocation3 + $0x4] sm:$0xf]
  %v1584 = vld [vmem:[#allocation3 + $0x8] sm:$0xf]
  %v1585 = vld [vmem:[#allocation3 + $0xc] sm:$0xf]
  %v1586 = vld [vmem:[#allocation3 + $0x10] sm:$0xf]
  %v1587 = vld [vmem:[#allocation3 + $0x14] sm:$0xf]
  %v1588 = vld [vmem:[#allocation3 + $0x18] sm:$0xf]
  %v1589 = vld [vmem:[#allocation3 + $0x1c] sm:$0xf]
  %v1590 = vld [vmem:[#allocation3 + $0x20] sm:$0xf]
  %v1591 = vld [vmem:[#allocation3 + $0x24] sm:$0xf]
  %v1592 = vld [vmem:[#allocation3 + $0x28] sm:$0xf]
  %v1593 = vld [vmem:[#allocation3 + $0x2c] sm:$0xf]
  %v1594 = vld [vmem:[#allocation3 + $0x30] sm:$0xf]
  %v1595 = vld [vmem:[#allocation3 + $0x34] sm:$0xf]
  %v1596 = vld [vmem:[#allocation3 + $0x38] sm:$0xf]
  %v1597 = vld [vmem:[#allocation3 + $0x3c] sm:$0xf]
  %v1598 = vld [vmem:[#allocation3 + $0x40] sm:$0xf]
  %v1599 = vld [vmem:[#allocation3 + $0x44] sm:$0xf]
  %v1600 = vld [vmem:[#allocation3 + $0x48] sm:$0xf]
  %v1601 = vld [vmem:[#allocation3 + $0x4c] sm:$0xf]
  %v1602 = vld [vmem:[#allocation3 + $0x50] sm:$0xf]
  %v1603 = vld [vmem:[#allocation3 + $0x54] sm:$0xf]
  %v1604 = vld [vmem:[#allocation3 + $0x58] sm:$0xf]
  %v1605 = vld [vmem:[#allocation3 + $0x5c] sm:$0xf]
  %v1606 = vld [vmem:[#allocation3 + $0x60] sm:$0xf]
  %v1607 = vld [vmem:[#allocation3 + $0x64] sm:$0xf]
  %v1608 = vld [vmem:[#allocation3 + $0x68] sm:$0xf]
  %v1609 = vld [vmem:[#allocation3 + $0x6c] sm:$0xf]
  %v1610 = vld [vmem:[#allocation3 + $0x70] sm:$0xf]
  %v1611 = vld [vmem:[#allocation3 + $0x74] sm:$0xf]
  %v1612 = vld [vmem:[#allocation3 + $0x78] sm:$0xf]
  %v1613 = vld [vmem:[#allocation3 + $0x7c] sm:$0xf]
  %v1614 = vld [vmem:[#allocation3 + $0x80] sm:$0xf]
  %v1615 = vld [vmem:[#allocation3 + $0x84] sm:$0xf]
  %v1616 = vld [vmem:[#allocation3 + $0x88] sm:$0xf]
  %v1617 = vld [vmem:[#allocation3 + $0x8c] sm:$0xf]
  %v1618 = vld [vmem:[#allocation3 + $0x90] sm:$0xf]
  %v1619 = vld [vmem:[#allocation3 + $0x94] sm:$0xf]
  %v1620 = vld [vmem:[#allocation3 + $0x98] sm:$0xf]
  %v1621 = vld [vmem:[#allocation3 + $0x9c] sm:$0xf]
  %v1622 = vld [vmem:[#allocation3 + $0xa0] sm:$0xf]
  %v1623 = vld [vmem:[#allocation3 + $0xa4] sm:$0xf]
  %v1624 = vld [vmem:[#allocation3 + $0xa8] sm:$0xf]
  %v1625 = vld [vmem:[#allocation3 + $0xac] sm:$0xf]
  %v1626 = vld [vmem:[#allocation3 + $0xb0] sm:$0xf]
  %v1627 = vld [vmem:[#allocation3 + $0xb4] sm:$0xf]
  %v1628 = vld [vmem:[#allocation3 + $0xb8] sm:$0xf]
  %v1629 = vld [vmem:[#allocation3 + $0xbc] sm:$0xf]
  %v1630 = vld [vmem:[#allocation3 + $0xc0] sm:$0xf]
  %v1631 = vld [vmem:[#allocation3 + $0xc4] sm:$0xf]
  %v1632 = vld [vmem:[#allocation3 + $0xc8] sm:$0xf]
  %v1633 = vld [vmem:[#allocation3 + $0xcc] sm:$0xf]
  %v1634 = vld [vmem:[#allocation3 + $0xd0] sm:$0xf]
  %v1635 = vld [vmem:[#allocation3 + $0xd4] sm:$0xf]
  %v1636 = vld [vmem:[#allocation3 + $0xd8] sm:$0xf]
  %v1637 = vld [vmem:[#allocation3 + $0xdc] sm:$0xf]
  %v1638 = vld [vmem:[#allocation3 + $0xe0] sm:$0xf]
  %v1639 = vld [vmem:[#allocation3 + $0xe4] sm:$0xf]
  %v1640 = vld [vmem:[#allocation3 + $0xe8] sm:$0xf]
  %v1641 = vld [vmem:[#allocation3 + $0xec] sm:$0xf]
  %v1642 = vld [vmem:[#allocation3 + $0xf0] sm:$0xf]
  %v1643 = vld [vmem:[#allocation3 + $0xf4] sm:$0xf]
  %v1644 = vld [vmem:[#allocation3 + $0xf8] sm:$0xf]
  %v1645 = vld [vmem:[#allocation3 + $0xfc] sm:$0xf]
  %v1646 = vld [vmem:[#allocation3 + $0x100] sm:$0xf]
  %v1647 = vld [vmem:[#allocation3 + $0x104] sm:$0xf]
  %v1648 = vld [vmem:[#allocation3 + $0x108] sm:$0xf]
  %v1649 = vld [vmem:[#allocation3 + $0x10c] sm:$0xf]
  %v1650 = vld [vmem:[#allocation3 + $0x110] sm:$0xf]
  %v1651 = vld [vmem:[#allocation3 + $0x114] sm:$0xf]
  %v1652 = vld [vmem:[#allocation3 + $0x118] sm:$0xf]
  %v1653 = vld [vmem:[#allocation3 + $0x11c] sm:$0xf]
  %v1654 = vld [vmem:[#allocation3 + $0x120] sm:$0xf]
  %v1655 = vld [vmem:[#allocation3 + $0x124] sm:$0xf]
  %v1656 = vld [vmem:[#allocation3 + $0x128] sm:$0xf]
  %v1657 = vld [vmem:[#allocation3 + $0x12c] sm:$0xf]
  %v1658 = vld [vmem:[#allocation3 + $0x130] sm:$0xf]
  %v1659 = vld [vmem:[#allocation3 + $0x134] sm:$0xf]
  %v1660 = vld [vmem:[#allocation3 + $0x138] sm:$0xf]
  %v1661 = vld [vmem:[#allocation3 + $0x13c] sm:$0xf]
  %v1662 = vld [vmem:[#allocation3 + $0x140] sm:$0xf]
  %v1663 = vld [vmem:[#allocation3 + $0x144] sm:$0xf]
  %v1664 = vld [vmem:[#allocation3 + $0x148] sm:$0xf]
  %v1665 = vld [vmem:[#allocation3 + $0x14c] sm:$0xf]
  %v1666 = vld [vmem:[#allocation3 + $0x150] sm:$0xf]
  %v1667 = vld [vmem:[#allocation3 + $0x154] sm:$0xf]
  %v1668 = vld [vmem:[#allocation3 + $0x158] sm:$0xf]
  %v1669 = vld [vmem:[#allocation3 + $0x15c] sm:$0xf]
  %v1670 = vld [vmem:[#allocation3 + $0x160] sm:$0xf]
  %v1671 = vld [vmem:[#allocation3 + $0x164] sm:$0xf]
  %v1672 = vld [vmem:[#allocation3 + $0x168] sm:$0xf]
  %v1673 = vld [vmem:[#allocation3 + $0x16c] sm:$0xf]
  %v1674 = vld [vmem:[#allocation3 + $0x170] sm:$0xf]
  %v1675 = vld [vmem:[#allocation3 + $0x174] sm:$0xf]
  %v1676 = vld [vmem:[#allocation3 + $0x178] sm:$0xf]
  %v1677 = vld [vmem:[#allocation3 + $0x17c] sm:$0xf]
  %v1678 = vld [vmem:[#allocation3 + $0x180] sm:$0xf]
  %v1679 = vld [vmem:[#allocation3 + $0x184] sm:$0xf]
  %v1680 = vld [vmem:[#allocation3 + $0x188] sm:$0xf]
  %v1681 = vld [vmem:[#allocation3 + $0x18c] sm:$0xf]
  %v1714 = vunpack.c.l.b16 %v1550
  %v1715 = vunpack.c.h.b16 %v1550
  %v1716 = vunpack.c.l.b16 %v1551
  %v1717 = vunpack.c.h.b16 %v1551
  %v1718 = vunpack.c.l.b16 %v1552
  %v1719 = vunpack.c.h.b16 %v1552
  %v1720 = vunpack.c.l.b16 %v1553
  %v1721 = vunpack.c.l.b16 %v1554
  %v1722 = vunpack.c.h.b16 %v1554
  %v1723 = vunpack.c.l.b16 %v1555
  %v1724 = vunpack.c.h.b16 %v1555
  %v1725 = vunpack.c.l.b16 %v1556
  %v1726 = vunpack.c.h.b16 %v1556
  %v1727 = vunpack.c.l.b16 %v1557
  %v1728 = vunpack.c.l.b16 %v1558
  %v1729 = vunpack.c.h.b16 %v1558
  %v1730 = vunpack.c.l.b16 %v1559
  %v1731 = vunpack.c.h.b16 %v1559
  %v1732 = vunpack.c.l.b16 %v1560
  %v1733 = vunpack.c.h.b16 %v1560
  %v1734 = vunpack.c.l.b16 %v1561
  %v1735 = vunpack.c.l.b16 %v1562
  %v1736 = vunpack.c.h.b16 %v1562
  %v1737 = vunpack.c.l.b16 %v1563
  %v1738 = vunpack.c.h.b16 %v1563
  %v1739 = vunpack.c.l.b16 %v1564
  %v1740 = vunpack.c.h.b16 %v1564
  %v1741 = vunpack.c.l.b16 %v1565
  %v1742 = vunpack.c.l.b16 %v1566
  %v1743 = vunpack.c.h.b16 %v1566
  %v1744 = vunpack.c.l.b16 %v1567
  %v1745 = vunpack.c.h.b16 %v1567
  %v1746 = vunpack.c.l.b16 %v1568
  %v1747 = vunpack.c.h.b16 %v1568
  %v1748 = vunpack.c.l.b16 %v1569
  %v1749 = vunpack.c.l.b16 %v1570
  %v1750 = vunpack.c.h.b16 %v1570
  %v1751 = vunpack.c.l.b16 %v1571
  %v1752 = vunpack.c.h.b16 %v1571
  %v1753 = vunpack.c.l.b16 %v1572
  %v1754 = vunpack.c.h.b16 %v1572
  %v1755 = vunpack.c.l.b16 %v1573
  %v1756 = vunpack.c.l.b16 %v1574
  %v1757 = vunpack.c.h.b16 %v1574
  %v1758 = vunpack.c.l.b16 %v1575
  %v1759 = vunpack.c.h.b16 %v1575
  %v1760 = vunpack.c.l.b16 %v1576
  %v1761 = vunpack.c.h.b16 %v1576
  %v1762 = vunpack.c.l.b16 %v1577
  %v1763 = vunpack.c.l.b16 %v1578
  %v1764 = vunpack.c.h.b16 %v1578
  %v1765 = vunpack.c.l.b16 %v1579
  %v1766 = vunpack.c.h.b16 %v1579
  %v1767 = vunpack.c.l.b16 %v1580
  %v1768 = vunpack.c.h.b16 %v1580
  %v1769 = vunpack.c.l.b16 %v1581
  %v1770 = vpack.c.b16 %v1721, %v1714
  %v1771 = vpack.c.b16 %v1722, %v1715
  %v1772 = vpack.c.b16 %v1723, %v1716
  %v1773 = vpack.c.b16 %v1724, %v1717
  %v1774 = vpack.c.b16 %v1725, %v1718
  %v1775 = vpack.c.b16 %v1726, %v1719
  %v1776 = vpack.c.b16 %v1727, %v1720
  %v1777 = vpack.c.b16 %v1735, %v1728
  %v1778 = vpack.c.b16 %v1736, %v1729
  %v1779 = vpack.c.b16 %v1737, %v1730
  %v1780 = vpack.c.b16 %v1738, %v1731
  %v1781 = vpack.c.b16 %v1739, %v1732
  %v1782 = vpack.c.b16 %v1740, %v1733
  %v1783 = vpack.c.b16 %v1741, %v1734
  %v1784 = vpack.c.b16 %v1749, %v1742
  %v1785 = vpack.c.b16 %v1750, %v1743
  %v1786 = vpack.c.b16 %v1751, %v1744
  %v1787 = vpack.c.b16 %v1752, %v1745
  %v1788 = vpack.c.b16 %v1753, %v1746
  %v1789 = vpack.c.b16 %v1754, %v1747
  %v1790 = vpack.c.b16 %v1755, %v1748
  %v1791 = vpack.c.b16 %v1763, %v1756
  %v1792 = vpack.c.b16 %v1764, %v1757
  %v1793 = vpack.c.b16 %v1765, %v1758
  %v1794 = vpack.c.b16 %v1766, %v1759
  %v1795 = vpack.c.b16 %v1767, %v1760
  %v1796 = vpack.c.b16 %v1768, %v1761
  %v1797 = vpack.c.b16 %v1769, %v1762
  %v1922 = vunpack.c.l.b16 %v1582
  %v1923 = vunpack.c.l.b16 %v1583
  %v1924 = vunpack.c.l.b16 %v1584
  %v1925 = vunpack.c.l.b16 %v1585
  %v1926 = vunpack.c.l.b16 %v1586
  %v1927 = vunpack.c.l.b16 %v1587
  %v1928 = vunpack.c.l.b16 %v1588
  %v1929 = vunpack.c.l.b16 %v1589
  %v1930 = vunpack.c.l.b16 %v1590
  %v1931 = vunpack.c.l.b16 %v1591
  %v1932 = vunpack.c.l.b16 %v1592
  %v1933 = vunpack.c.l.b16 %v1593
  %v1934 = vunpack.c.l.b16 %v1594
  %v1935 = vunpack.c.l.b16 %v1595
  %v1936 = vunpack.c.l.b16 %v1596
  %v1937 = vunpack.c.l.b16 %v1597
  %v1938 = vunpack.c.l.b16 %v1598
  %v1939 = vunpack.c.l.b16 %v1599
  %v1940 = vunpack.c.l.b16 %v1600
  %v1941 = vunpack.c.l.b16 %v1601
  %v1942 = vunpack.c.l.b16 %v1602
  %v1943 = vunpack.c.l.b16 %v1603
  %v1944 = vunpack.c.l.b16 %v1604
  %v1945 = vunpack.c.l.b16 %v1605
  %v1946 = vunpack.c.l.b16 %v1606
  %v1947 = vunpack.c.l.b16 %v1607
  %v1948 = vunpack.c.l.b16 %v1608
  %v1949 = vunpack.c.l.b16 %v1609
  %v1950 = vunpack.c.l.b16 %v1610
  %v1951 = vunpack.c.l.b16 %v1611
  %v1952 = vunpack.c.l.b16 %v1612
  %v1953 = vunpack.c.l.b16 %v1613
  %v1954 = vunpack.c.l.b16 %v1614
  %v1955 = vunpack.c.l.b16 %v1615
  %v1956 = vunpack.c.l.b16 %v1616
  %v1957 = vunpack.c.l.b16 %v1617
  %v1958 = vunpack.c.l.b16 %v1618
  %v1959 = vunpack.c.l.b16 %v1619
  %v1960 = vunpack.c.l.b16 %v1620
  %v1961 = vunpack.c.l.b16 %v1621
  %v1962 = vunpack.c.l.b16 %v1622
  %v1963 = vunpack.c.l.b16 %v1623
  %v1964 = vunpack.c.l.b16 %v1624
  %v1965 = vunpack.c.l.b16 %v1625
  %v1966 = vunpack.c.l.b16 %v1626
  %v1967 = vunpack.c.l.b16 %v1627
  %v1968 = vunpack.c.l.b16 %v1628
  %v1969 = vunpack.c.l.b16 %v1629
  %v1970 = vunpack.c.l.b16 %v1630
  %v1971 = vunpack.c.l.b16 %v1631
  %v1972 = vunpack.c.l.b16 %v1632
  %v1973 = vunpack.c.l.b16 %v1633
  %v1974 = vunpack.c.l.b16 %v1634
  %v1975 = vunpack.c.l.b16 %v1635
  %v1976 = vunpack.c.l.b16 %v1636
  %v1977 = vunpack.c.l.b16 %v1637
  %v1978 = vunpack.c.l.b16 %v1638
  %v1979 = vunpack.c.l.b16 %v1639
  %v1980 = vunpack.c.l.b16 %v1640
  %v1981 = vunpack.c.l.b16 %v1641
  %v1982 = vunpack.c.l.b16 %v1642
  %v1983 = vunpack.c.l.b16 %v1643
  %v1984 = vunpack.c.l.b16 %v1644
  %v1985 = vunpack.c.l.b16 %v1645
  %v1986 = vunpack.c.l.b16 %v1646
  %v1987 = vunpack.c.l.b16 %v1647
  %v1988 = vunpack.c.l.b16 %v1648
  %v1989 = vunpack.c.l.b16 %v1649
  %v1990 = vunpack.c.l.b16 %v1650
  %v1991 = vunpack.c.l.b16 %v1651
  %v1992 = vunpack.c.l.b16 %v1652
  %v1993 = vunpack.c.l.b16 %v1653
  %v1994 = vunpack.c.l.b16 %v1654
  %v1995 = vunpack.c.l.b16 %v1655
  %v1996 = vunpack.c.l.b16 %v1656
  %v1997 = vunpack.c.l.b16 %v1657
  %v1998 = vunpack.c.l.b16 %v1658
  %v1999 = vunpack.c.l.b16 %v1659
  %v2000 = vunpack.c.l.b16 %v1660
  %v2001 = vunpack.c.l.b16 %v1661
  %v2002 = vunpack.c.l.b16 %v1662
  %v2003 = vunpack.c.l.b16 %v1663
  %v2004 = vunpack.c.l.b16 %v1664
  %v2005 = vunpack.c.l.b16 %v1665
  %v2006 = vunpack.c.l.b16 %v1666
  %v2007 = vunpack.c.l.b16 %v1667
  %v2008 = vunpack.c.l.b16 %v1668
  %v2009 = vunpack.c.l.b16 %v1669
  %v2010 = vunpack.c.l.b16 %v1670
  %v2011 = vunpack.c.l.b16 %v1671
  %v2012 = vunpack.c.l.b16 %v1672
  %v2013 = vunpack.c.l.b16 %v1673
  %v2014 = vunpack.c.l.b16 %v1674
  %v2015 = vunpack.c.l.b16 %v1675
  %v2016 = vunpack.c.l.b16 %v1676
  %v2017 = vunpack.c.l.b16 %v1677
  %v2018 = vunpack.c.l.b16 %v1678
  %v2019 = vunpack.c.l.b16 %v1679
  %v2020 = vunpack.c.l.b16 %v1680
  %v2021 = vunpack.c.l.b16 %v1681
  %v2022 = vpack.c.b16 %v1923, %v1922
  %v2023 = vpack.c.b16 %v1925, %v1924
  %v2024 = vpack.c.b16 %v1927, %v1926
  %v2025 = vpack.c.b16 %v1929, %v1928
  %v2026 = vpack.c.b16 %v1931, %v1930
  %v2027 = vpack.c.b16 %v1933, %v1932
  %v2028 = vpack.c.b16 %v1935, %v1934
  %v2029 = vpack.c.b16 %v1937, %v1936
  %v2030 = vpack.c.b16 %v1939, %v1938
  %v2031 = vpack.c.b16 %v1941, %v1940
  %v2032 = vpack.c.b16 %v1943, %v1942
  %v2033 = vpack.c.b16 %v1945, %v1944
  %v2034 = vpack.c.b16 %v1947, %v1946
  %v2035 = vpack.c.b16 %v1949, %v1948
  %v2036 = vpack.c.b16 %v1951, %v1950
  %v2037 = vpack.c.b16 %v1953, %v1952
  %v2038 = vpack.c.b16 %v1955, %v1954
  %v2039 = vpack.c.b16 %v1957, %v1956
  %v2040 = vpack.c.b16 %v1959, %v1958
  %v2041 = vpack.c.b16 %v1961, %v1960
  %v2042 = vpack.c.b16 %v1963, %v1962
  %v2043 = vpack.c.b16 %v1965, %v1964
  %v2044 = vpack.c.b16 %v1967, %v1966
  %v2045 = vpack.c.b16 %v1969, %v1968
  %v2046 = vpack.c.b16 %v1971, %v1970
  %v2047 = vpack.c.b16 %v1973, %v1972
  %v2048 = vpack.c.b16 %v1975, %v1974
  %v2049 = vpack.c.b16 %v1977, %v1976
  %v2050 = vpack.c.b16 %v1979, %v1978
  %v2051 = vpack.c.b16 %v1981, %v1980
  %v2052 = vpack.c.b16 %v1983, %v1982
  %v2053 = vpack.c.b16 %v1985, %v1984
  %v2054 = vpack.c.b16 %v1987, %v1986
  %v2055 = vpack.c.b16 %v1989, %v1988
  %v2056 = vpack.c.b16 %v1991, %v1990
  %v2057 = vpack.c.b16 %v1993, %v1992
  %v2058 = vpack.c.b16 %v1995, %v1994
  %v2059 = vpack.c.b16 %v1997, %v1996
  %v2060 = vpack.c.b16 %v1999, %v1998
  %v2061 = vpack.c.b16 %v2001, %v2000
  %v2062 = vpack.c.b16 %v2003, %v2002
  %v2063 = vpack.c.b16 %v2005, %v2004
  %v2064 = vpack.c.b16 %v2007, %v2006
  %v2065 = vpack.c.b16 %v2009, %v2008
  %v2066 = vpack.c.b16 %v2011, %v2010
  %v2067 = vpack.c.b16 %v2013, %v2012
  %v2068 = vpack.c.b16 %v2015, %v2014
  %v2069 = vpack.c.b16 %v2017, %v2016
  %v2070 = vpack.c.b16 %v2019, %v2018
  %v2071 = vpack.c.b16 %v2021, %v2020
  %vm2122 = vcmask 261120
  %v2124 = vsel %vm2122, %v1776, 0
  %v2127 = vsel %vm2122, %v1783, 0
  %v2130 = vsel %vm2122, %v1790, 0
  %v2133 = vsel %vm2122, %v1797, 0
  %2135 = vmatpush.bf16.msra.mxu0 %v2029
  %2136 = vmatpush.bf16.msra.mxu0 %v2028
  %2137 = vmatpush.bf16.msra.mxu0 %v2027
  %2138 = vmatpush.bf16.msra.mxu0 %v2026
  %2139 = vmatpush.bf16.msra.mxu0 %v2025
  %2140 = vmatpush.bf16.msra.mxu0 %v2024
  %2141 = vmatpush.bf16.msra.mxu0 %v2023
  %2142 = vmatpush.bf16.msra.mxu0 %v2022
  %2143 = vmatmul.bf16.gmra.mxu0 %v1770
  %v2144 = vpop.f32.mrf.mxu0
  %v2145 = vadd.f32 %v74, %v2144
  %v2146 = vpop.f32.mrf.mxu0
  %v2147 = vadd.f32 %v79, %v2146
  %2148 = vmatmul.bf16.gmra.mxu0 %v1777
  %v2149 = vpop.f32.mrf.mxu0
  %v2150 = vadd.f32 %v84, %v2149
  %v2151 = vpop.f32.mrf.mxu0
  %v2152 = vadd.f32 %v89, %v2151
  %2153 = vmatmul.bf16.gmra.mxu0 %v1784
  %v2154 = vpop.f32.mrf.mxu0
  %v2155 = vadd.f32 %v94, %v2154
  %v2156 = vpop.f32.mrf.mxu0
  %v2157 = vadd.f32 %v99, %v2156
  %2158 = vmatmul.bf16.gmra.mxu0 %v1791
  %v2159 = vpop.f32.mrf.mxu0
  %v2160 = vadd.f32 %v104, %v2159
  %v2161 = vpop.f32.mrf.mxu0
  %v2162 = vadd.f32 %v109, %v2161
  %2163 = vdwg.mxu0
  %2164 = vmatpush.bf16.msra.mxu0 %v2037
  %2165 = vmatpush.bf16.msra.mxu0 %v2036
  %2166 = vmatpush.bf16.msra.mxu0 %v2035
  %2167 = vmatpush.bf16.msra.mxu0 %v2034
  %2168 = vmatpush.bf16.msra.mxu0 %v2033
  %2169 = vmatpush.bf16.msra.mxu0 %v2032
  %2170 = vmatpush.bf16.msra.mxu0 %v2031
  %2171 = vmatpush.bf16.msra.mxu0 %v2030
  %2172 = vmatmul.bf16.gmra.mxu0 %v1771
  %v2173 = vpop.f32.mrf.mxu0
  %v2174 = vadd.f32 %v2145, %v2173
  %v2175 = vpop.f32.mrf.mxu0
  %v2176 = vadd.f32 %v2147, %v2175
  %2177 = vmatmul.bf16.gmra.mxu0 %v1778
  %v2178 = vpop.f32.mrf.mxu0
  %v2179 = vadd.f32 %v2150, %v2178
  %v2180 = vpop.f32.mrf.mxu0
  %v2181 = vadd.f32 %v2152, %v2180
  %2182 = vmatmul.bf16.gmra.mxu0 %v1785
  %v2183 = vpop.f32.mrf.mxu0
  %v2184 = vadd.f32 %v2155, %v2183
  %v2185 = vpop.f32.mrf.mxu0
  %v2186 = vadd.f32 %v2157, %v2185
  %2187 = vmatmul.bf16.gmra.mxu0 %v1792
  %v2188 = vpop.f32.mrf.mxu0
  %v2189 = vadd.f32 %v2160, %v2188
  %v2190 = vpop.f32.mrf.mxu0
  %v2191 = vadd.f32 %v2162, %v2190
  %2192 = vdwg.mxu0
  %2193 = vmatpush.bf16.msra.mxu0 %v2045
  %2194 = vmatpush.bf16.msra.mxu0 %v2044
  %2195 = vmatpush.bf16.msra.mxu0 %v2043
  %2196 = vmatpush.bf16.msra.mxu0 %v2042
  %2197 = vmatpush.bf16.msra.mxu0 %v2041
  %2198 = vmatpush.bf16.msra.mxu0 %v2040
  %2199 = vmatpush.bf16.msra.mxu0 %v2039
  %2200 = vmatpush.bf16.msra.mxu0 %v2038
  %2201 = vmatmul.bf16.gmra.mxu0 %v1772
  %v2202 = vpop.f32.mrf.mxu0
  %v2203 = vadd.f32 %v2174, %v2202
  %v2204 = vpop.f32.mrf.mxu0
  %v2205 = vadd.f32 %v2176, %v2204
  %2206 = vmatmul.bf16.gmra.mxu0 %v1779
  %v2207 = vpop.f32.mrf.mxu0
  %v2208 = vadd.f32 %v2179, %v2207
  %v2209 = vpop.f32.mrf.mxu0
  %v2210 = vadd.f32 %v2181, %v2209
  %2211 = vmatmul.bf16.gmra.mxu0 %v1786
  %v2212 = vpop.f32.mrf.mxu0
  %v2213 = vadd.f32 %v2184, %v2212
  %v2214 = vpop.f32.mrf.mxu0
  %v2215 = vadd.f32 %v2186, %v2214
  %2216 = vmatmul.bf16.gmra.mxu0 %v1793
  %v2217 = vpop.f32.mrf.mxu0
  %v2218 = vadd.f32 %v2189, %v2217
  %v2219 = vpop.f32.mrf.mxu0
  %v2220 = vadd.f32 %v2191, %v2219
  %2221 = vdwg.mxu0
  %2222 = vmatpush.bf16.msra.mxu0 %v2053
  %2223 = vmatpush.bf16.msra.mxu0 %v2052
  %2224 = vmatpush.bf16.msra.mxu0 %v2051
  %2225 = vmatpush.bf16.msra.mxu0 %v2050
  %2226 = vmatpush.bf16.msra.mxu0 %v2049
  %2227 = vmatpush.bf16.msra.mxu0 %v2048
  %2228 = vmatpush.bf16.msra.mxu0 %v2047
  %2229 = vmatpush.bf16.msra.mxu0 %v2046
  %2230 = vmatmul.bf16.gmra.mxu0 %v1773
  %v2231 = vpop.f32.mrf.mxu0
  %v2232 = vadd.f32 %v2203, %v2231
  %v2233 = vpop.f32.mrf.mxu0
  %v2234 = vadd.f32 %v2205, %v2233
  %2235 = vmatmul.bf16.gmra.mxu0 %v1780
  %v2236 = vpop.f32.mrf.mxu0
  %v2237 = vadd.f32 %v2208, %v2236
  %v2238 = vpop.f32.mrf.mxu0
  %v2239 = vadd.f32 %v2210, %v2238
  %2240 = vmatmul.bf16.gmra.mxu0 %v1787
  %v2241 = vpop.f32.mrf.mxu0
  %v2242 = vadd.f32 %v2213, %v2241
  %v2243 = vpop.f32.mrf.mxu0
  %v2244 = vadd.f32 %v2215, %v2243
  %2245 = vmatmul.bf16.gmra.mxu0 %v1794
  %v2246 = vpop.f32.mrf.mxu0
  %v2247 = vadd.f32 %v2218, %v2246
  %v2248 = vpop.f32.mrf.mxu0
  %v2249 = vadd.f32 %v2220, %v2248
  %2250 = vdwg.mxu0
  %2251 = vmatpush.bf16.msra.mxu0 %v2061
  %2252 = vmatpush.bf16.msra.mxu0 %v2060
  %2253 = vmatpush.bf16.msra.mxu0 %v2059
  %2254 = vmatpush.bf16.msra.mxu0 %v2058
  %2255 = vmatpush.bf16.msra.mxu0 %v2057
  %2256 = vmatpush.bf16.msra.mxu0 %v2056
  %2257 = vmatpush.bf16.msra.mxu0 %v2055
  %2258 = vmatpush.bf16.msra.mxu0 %v2054
  %2259 = vmatmul.bf16.gmra.mxu0 %v1774
  %v2260 = vpop.f32.mrf.mxu0
  %v2261 = vadd.f32 %v2232, %v2260
  %v2262 = vpop.f32.mrf.mxu0
  %v2263 = vadd.f32 %v2234, %v2262
  %2264 = vmatmul.bf16.gmra.mxu0 %v1781
  %v2265 = vpop.f32.mrf.mxu0
  %v2266 = vadd.f32 %v2237, %v2265
  %v2267 = vpop.f32.mrf.mxu0
  %v2268 = vadd.f32 %v2239, %v2267
  %2269 = vmatmul.bf16.gmra.mxu0 %v1788
  %v2270 = vpop.f32.mrf.mxu0
  %v2271 = vadd.f32 %v2242, %v2270
  %v2272 = vpop.f32.mrf.mxu0
  %v2273 = vadd.f32 %v2244, %v2272
  %2274 = vmatmul.bf16.gmra.mxu0 %v1795
  %v2275 = vpop.f32.mrf.mxu0
  %v2276 = vadd.f32 %v2247, %v2275
  %v2277 = vpop.f32.mrf.mxu0
  %v2278 = vadd.f32 %v2249, %v2277
  %2279 = vdwg.mxu0
  %2280 = vmatpush.bf16.msra.mxu0 %v2069
  %2281 = vmatpush.bf16.msra.mxu0 %v2068
  %2282 = vmatpush.bf16.msra.mxu0 %v2067
  %2283 = vmatpush.bf16.msra.mxu0 %v2066
  %2284 = vmatpush.bf16.msra.mxu0 %v2065
  %2285 = vmatpush.bf16.msra.mxu0 %v2064
  %2286 = vmatpush.bf16.msra.mxu0 %v2063
  %2287 = vmatpush.bf16.msra.mxu0 %v2062
  %2288 = vmatmul.bf16.gmra.mxu0 %v1775
  %v2289 = vpop.f32.mrf.mxu0
  %v2290 = vadd.f32 %v2261, %v2289
  %v2291 = vpop.f32.mrf.mxu0
  %v2292 = vadd.f32 %v2263, %v2291
  %2293 = vmatmul.bf16.gmra.mxu0 %v1782
  %v2294 = vpop.f32.mrf.mxu0
  %v2295 = vadd.f32 %v2266, %v2294
  %v2296 = vpop.f32.mrf.mxu0
  %v2297 = vadd.f32 %v2268, %v2296
  %2298 = vmatmul.bf16.gmra.mxu0 %v1789
  %v2299 = vpop.f32.mrf.mxu0
  %v2300 = vadd.f32 %v2271, %v2299
  %v2301 = vpop.f32.mrf.mxu0
  %v2302 = vadd.f32 %v2273, %v2301
  %2303 = vmatmul.bf16.gmra.mxu0 %v1796
  %v2304 = vpop.f32.mrf.mxu0
  %v2305 = vadd.f32 %v2276, %v2304
  %v2306 = vpop.f32.mrf.mxu0
  %v2307 = vadd.f32 %v2278, %v2306
  %2308 = vdwg.mxu0
  %2309 = vmatpush.bf16.msra.mxu0 0
  %2310 = vmatpush.bf16.msra.mxu0 0
  %2311 = vmatpush.bf16.msra.mxu0 0
  %2312 = vmatpush.bf16.msra.mxu0 0
  %2313 = vmatpush.bf16.msra.mxu0 0
  %2314 = vmatpush.bf16.msra.mxu0 0
  %2315 = vmatpush.bf16.msra.mxu0 %v2071
  %2316 = vmatpush.bf16.msra.mxu0 %v2070
  %2317 = vmatmul.bf16.gmra.mxu0 %v2124
  %v2318 = vpop.f32.mrf.mxu0
  %v2319 = vadd.f32 %v2290, %v2318
  %v2320 = vpop.f32.mrf.mxu0
  %v2321 = vadd.f32 %v2292, %v2320
  %2322 = vmatmul.bf16.gmra.mxu0 %v2127
  %v2323 = vpop.f32.mrf.mxu0
  %v2324 = vadd.f32 %v2295, %v2323
  %v2325 = vpop.f32.mrf.mxu0
  %v2326 = vadd.f32 %v2297, %v2325
  %2327 = vmatmul.bf16.gmra.mxu0 %v2130
  %v2328 = vpop.f32.mrf.mxu0
  %v2329 = vadd.f32 %v2300, %v2328
  %v2330 = vpop.f32.mrf.mxu0
  %v2331 = vadd.f32 %v2302, %v2330
  %2332 = vmatmul.bf16.gmra.mxu0 %v2133
  %v2333 = vpop.f32.mrf.mxu0
  %v2334 = vadd.f32 %v2305, %v2333
  %v2335 = vpop.f32.mrf.mxu0
  %v2336 = vadd.f32 %v2307, %v2335
  %2337 = vdwg.mxu0
  %v2338 = vmax.f32 %v2319, 0.0
  %v2339 = vmax.f32 %v2321, 0.0
  %v2340 = vmax.f32 %v2324, 0.0
  %v2341 = vmax.f32 %v2326, 0.0
  %v2342 = vmax.f32 %v2329, 0.0
  %v2343 = vmax.f32 %v2331, 0.0
  %v2344 = vmax.f32 %v2334, 0.0
  %v2345 = vmax.f32 %v2336, 0.0
  %2346 = vst [vmem:[%s7] sm:$0xff] %v2338
  %2347 = vst [vmem:[%s7 + $0x8] sm:$0xff] %v2339
  %2348 = vst [vmem:[%s7 + $0x10] sm:$0xff] %v2340
  %2349 = vst [vmem:[%s7 + $0x18] sm:$0xff] %v2341
  %2350 = vst [vmem:[%s7 + $0x20] sm:$0xff] %v2342
  %2351 = vst [vmem:[%s7 + $0x28] sm:$0xff] %v2343
  %2352 = vst [vmem:[%s7 + $0x30] sm:$0xff] %v2344
  %2353 = vst [vmem:[%s7 + $0x38] sm:$0xff] %v2345
  // Predicated region
  $region44: #{network_forward.1} parent=0 // pred_check
    _
  $region45: #{network_forward.1} parent=0 // pred_check_branch
    %2355 = sbr.rel (0) target = $region47
  $region46: #{network_forward.1} parent=0 // pred_region
    _
  $region47: #{network_forward.1} parent=0 // pred_fallthru
    _
  // Predicated region
  $region48: #{network_forward.1} parent=0 // pred_check
    _
  $region49: #{network_forward.1} parent=0 // pred_check_branch
    %2357 = sbr.rel (0) target = $region51
  $region50: #{network_forward.1} parent=0 // pred_region
    _
  $region51: #{network_forward.1} parent=0 // pred_fallthru
    _

</llo_original>
